<compile_context>
chip_gen: v6e
topology: v6e:2x2x1
jax: 0.10.0
libtpu: 0.0.40
codegen_flags: <defaults>
</compile_context>

<pallas_src>
import jax
import jax.numpy as jnp
from jax.experimental import pallas as pl
from jax.experimental.pallas import tpu as pltpu

IN_FEATURES = 1836
HIDDEN = 150
OUT_FEATURES = 159

# Lane-dense padded sizes (multiples of 128) for the hidden / logit feature
# axes.  The 1836-wide input-feature axis is NOT padded (streamed full-dim).
HID_PAD = 256   # 2 * 128
OUT_PAD = 256   # 2 * 128


def _round_up(x, m):
    return (x + m - 1) // m * m


def infnet_kernel(x_ref, w1_ref, b1_ref, w2_ref, b2_ref, w3_ref,
                  sig_ref, logit_ref):
    cdt = w1_ref.dtype  # MXU compute dtype (f32 or bf16); accumulation is f32
    # layer1: relu(x @ W1 + b1)
    h = jnp.dot(x_ref[...].astype(cdt), w1_ref[...],
                preferred_element_type=jnp.float32)
    h = jnp.maximum(h + b1_ref[...], 0.0)
    # layer2: relu(h @ W2 + b2)
    h = jnp.dot(h.astype(cdt), w2_ref[...], preferred_element_type=jnp.float32)
    h = jnp.maximum(h + b2_ref[...], 0.0)
    # layer3 (no bias): logits = h @ W3
    logits = jnp.dot(h.astype(cdt), w3_ref[...],
                     preferred_element_type=jnp.float32)
    logit_ref[...] = logits.astype(logit_ref.dtype)
    sig_ref[...] = jax.nn.sigmoid(logits).astype(sig_ref.dtype)   # exp on EUP


def prepare_params(w1, b1, w2, b2, w3, *, compute_dtype=jnp.float32):
    """Pad (and optionally cast) the weights ONCE, outside the per-call path.

    Weights are stored [in, out] (transpose of PyTorch's [out, in]); only the
    hidden/logit output axes are padded to lane-dense multiples of 128.
    Biases stay f32 (added to the f32 accumulator). Zero padding is exact
    through bias+ReLU+matmul.
    """
    cdt = jnp.dtype(compute_dtype)
    w1p = jnp.zeros((IN_FEATURES, HID_PAD), cdt).at[:, :HIDDEN].set(
        w1.astype(cdt))
    b1p = jnp.zeros((1, HID_PAD), jnp.float32).at[:, :HIDDEN].set(
        jnp.asarray(b1, jnp.float32).reshape(1, HIDDEN))
    w2p = jnp.zeros((HID_PAD, HID_PAD), cdt).at[:HIDDEN, :HIDDEN].set(
        w2.astype(cdt))
    b2p = jnp.zeros((1, HID_PAD), jnp.float32).at[:, :HIDDEN].set(
        jnp.asarray(b2, jnp.float32).reshape(1, HIDDEN))
    w3p = jnp.zeros((HID_PAD, OUT_PAD), cdt).at[:HIDDEN, :OUT_FEATURES].set(
        w3.astype(cdt))
    return w1p, b1p, w2p, b2p, w3p


def infnet_forward(x, params, *, block_rows=512, trim_outputs=True):
    """Fused InfNet forward.

    x:      [B, 1836] activations (f32, or bf16 to halve the x HBM stream).
    params: output of prepare_params().
    Returns (sigmoid(logits), logits) trimmed to [B, 159]; with
    trim_outputs=False the padded [B_pad, 256] buffers are returned so
    downstream code can skip the slice copies.
    """
    w1p, b1p, w2p, b2p, w3p = params
    B, F = x.shape
    assert F == IN_FEATURES, x.shape

    # --- batch tiling -------------------------------------------------------
    # Spread rows evenly over grid steps (over-pad < row_align per step) and
    # force >= 2 steps when B allows so v7x's 2 TensorCores both get work.
    row_align = 8 if jnp.dtype(x.dtype).itemsize >= 4 else 16
    n_steps = max(pl.cdiv(B, block_rows), 2 if B >= 2 * row_align else 1)
    b_tile = _round_up(pl.cdiv(B, n_steps), row_align)
    n_steps = pl.cdiv(B, b_tile)
    B_pad = b_tile * n_steps

    if B_pad != B:
        # Batch-tail pad only (the 1836 feature axis streams unpadded). Callers
        # that hand in a tile-divisible B skip this copy entirely.
        x = jnp.pad(x, ((0, B_pad - B), (0, 0)))

    flops = 2 * B_pad * (IN_FEATURES * HID_PAD + HID_PAD * HID_PAD
                         + HID_PAD * OUT_PAD)
    param_bytes = sum(int(p.size) * p.dtype.itemsize
                      for p in (w1p, b1p, w2p, b2p, w3p))
    bytes_accessed = (int(x.size) * x.dtype.itemsize + param_bytes
                      + 2 * B_pad * OUT_PAD * 4)

    sig, logits = pl.pallas_call(
        infnet_kernel,
        out_shape=(jax.ShapeDtypeStruct((B_pad, OUT_PAD), jnp.float32),
                   jax.ShapeDtypeStruct((B_pad, OUT_PAD), jnp.float32)),
        grid=(n_steps,),
        in_specs=[
            # x streamed per grid step; feature axis kept at its full 1836
            # extent (no wrapper-side pad copy -- Mosaic masks the K tail).
            pl.BlockSpec((b_tile, IN_FEATURES), lambda i: (i, 0)),
            # Weights/biases: constant index_map -> fetched once, VMEM
            # resident; Buffered(1) turns off pointless double buffering.
            pl.BlockSpec((IN_FEATURES, HID_PAD), lambda i: (0, 0),
                         pipeline_mode=pl.Buffered(1)),
            pl.BlockSpec((1, HID_PAD), lambda i: (0, 0),
                         pipeline_mode=pl.Buffered(1)),
            pl.BlockSpec((HID_PAD, HID_PAD), lambda i: (0, 0),
                         pipeline_mode=pl.Buffered(1)),
            pl.BlockSpec((1, HID_PAD), lambda i: (0, 0),
                         pipeline_mode=pl.Buffered(1)),
            pl.BlockSpec((HID_PAD, OUT_PAD), lambda i: (0, 0),
                         pipeline_mode=pl.Buffered(1)),
        ],
        out_specs=(
            pl.BlockSpec((b_tile, OUT_PAD), lambda i: (i, 0)),
            pl.BlockSpec((b_tile, OUT_PAD), lambda i: (i, 0)),
        ),
        compiler_params=pltpu.CompilerParams(
            dimension_semantics=("parallel",),      # batch axis; v7x 2 TCs
            vmem_limit_bytes=48 * 1024 * 1024,      # big b_tile legal on v5e
        ),
        cost_estimate=pl.CostEstimate(
            flops=flops,
            transcendentals=B_pad * OUT_PAD,        # sigmoid exp
            bytes_accessed=bytes_accessed,
        ),
    )(x, w1p, b1p, w2p, b2p, w3p)

    if trim_outputs:
        return sig[:B, :OUT_FEATURES], logits[:B, :OUT_FEATURES]
    return sig, logits


def init_params(key):
    """Deterministic init mimicking nn.Linear default U(-1/sqrt(fan_in), +)."""
    k1, k2, k3, k4, k5 = jax.random.split(key, 5)
    bound1 = 1.0 / jnp.sqrt(jnp.float32(IN_FEATURES))
    bound2 = 1.0 / jnp.sqrt(jnp.float32(HIDDEN))
    # Stored as [in, out] (transpose of PyTorch's [out, in]).
    w1 = jax.random.uniform(k1, (IN_FEATURES, HIDDEN), jnp.float32, -bound1, bound1)
    b1 = jax.random.uniform(k2, (1, HIDDEN), jnp.float32, -bound1, bound1)
    w2 = jax.random.uniform(k3, (HIDDEN, HIDDEN), jnp.float32, -bound2, bound2)
    b2 = jax.random.uniform(k4, (1, HIDDEN), jnp.float32, -bound2, bound2)
    w3 = jax.random.uniform(k5, (HIDDEN, OUT_FEATURES), jnp.float32, -bound2, bound2)
    return w1, b1, w2, b2, w3


def infnet_reference(x, w1, b1, w2, b2, w3):
    h = jnp.maximum(x @ w1 + b1, 0.0)
    h = jnp.maximum(h @ w2 + b2, 0.0)
    logits = h @ w3
    return jax.nn.sigmoid(logits), logits


if __name__ == "__main__":
    key = jax.random.PRNGKey(0)
    kx, kp = jax.random.split(key)

    B = 16  # small demo batch; tiling gives grid=(2,) with b_tile=8, no padding
    x = jax.random.normal(kx, (B, IN_FEATURES), jnp.float32)
    w1, b1, w2, b2, w3 = init_params(kp)

    ref_sig, ref_logits = infnet_reference(x, w1, b1, w2, b2, w3)

    # Default f32 compute path (matches the PyTorch module semantics).
    params_f32 = prepare_params(w1, b1, w2, b2, w3, compute_dtype=jnp.float32)
    sig, logits = infnet_forward(x, params_f32)
    sig = jax.block_until_ready(sig)
    logits = jax.block_until_ready(logits)
    assert sig.shape == (B, OUT_FEATURES), sig.shape
    assert logits.shape == (B, OUT_FEATURES), logits.shape
    assert jnp.allclose(logits, ref_logits, atol=2e-4, rtol=2e-4), "f32 logits mismatch"
    assert jnp.allclose(sig, ref_sig, atol=2e-4, rtol=2e-4), "f32 sigmoid mismatch"

    # Optional bf16 MXU path (perf knob, mainly for v5e) -- relaxed tolerance.
    params_bf16 = prepare_params(w1, b1, w2, b2, w3, compute_dtype=jnp.bfloat16)
    sig16, logits16 = infnet_forward(x, params_bf16)
    sig16 = jax.block_until_ready(sig16)
    logits16 = jax.block_until_ready(logits16)
    assert jnp.allclose(logits16, ref_logits, atol=5e-2, rtol=5e-2), "bf16 logits mismatch"
    assert jnp.allclose(sig16, ref_sig, atol=2e-2, rtol=2e-2), "bf16 sigmoid mismatch"

    print("KERNEL_OK")
</pallas_src>

<mosaic_0001>
module attributes {stable_mosaic.version = 11 : i64} {
  func.func @infnet_kernel(%arg0: i32, %arg1: memref<8x1836xf32, #tpu.memory_space<vmem>>, %arg2: memref<1836x256xf32, #tpu.memory_space<vmem>>, %arg3: memref<1x256xf32, #tpu.memory_space<vmem>>, %arg4: memref<256x256xf32, #tpu.memory_space<vmem>>, %arg5: memref<1x256xf32, #tpu.memory_space<vmem>>, %arg6: memref<256x256xf32, #tpu.memory_space<vmem>>, %arg7: memref<8x256xf32, #tpu.memory_space<vmem>>, %arg8: memref<8x256xf32, #tpu.memory_space<vmem>>) attributes {dimension_semantics = [#tpu.dimension_semantics<parallel>], iteration_bounds = array<i64: 2>, scalar_prefetch = 0 : i64, scratch_operands = 0 : i64, tpu.core_type = #tpu.core_type<tc>, window_params = [{transform_indices = @transform_0, window_bounds = array<i64: 8, 1836>}, {pipeline_mode = #tpu.pipeline_mode<synchronous>, transform_indices = @transform_1, window_bounds = array<i64: 1836, 256>}, {pipeline_mode = #tpu.pipeline_mode<synchronous>, transform_indices = @transform_2, window_bounds = array<i64: 1, 256>}, {pipeline_mode = #tpu.pipeline_mode<synchronous>, transform_indices = @transform_3, window_bounds = array<i64: 256, 256>}, {pipeline_mode = #tpu.pipeline_mode<synchronous>, transform_indices = @transform_4, window_bounds = array<i64: 1, 256>}, {pipeline_mode = #tpu.pipeline_mode<synchronous>, transform_indices = @transform_5, window_bounds = array<i64: 256, 256>}, {transform_indices = @transform_6, window_bounds = array<i64: 8, 256>}, {transform_indices = @transform_7, window_bounds = array<i64: 8, 256>}]} {
    %c0 = arith.constant 0 : index
    %c0_0 = arith.constant 0 : index
    %0 = vector.load %arg1[%c0, %c0_0] : memref<8x1836xf32, #tpu.memory_space<vmem>>, vector<8x1836xf32>
    %c0_1 = arith.constant 0 : index
    %c0_2 = arith.constant 0 : index
    %1 = vector.load %arg2[%c0_1, %c0_2] : memref<1836x256xf32, #tpu.memory_space<vmem>>, vector<1836x256xf32>
    %cst = arith.constant dense<0.000000e+00> : vector<8x256xf32>
    %2 = tpu.matmul %0, %1, %cst {dimension_numbers = #tpu.dot_dimension_numbers<[1], [0], [0], [1], [0, 0, 1, 1], [], []>} : vector<8x1836xf32>, vector<1836x256xf32>, vector<8x256xf32> -> vector<8x256xf32>
    %c0_3 = arith.constant 0 : index
    %c0_4 = arith.constant 0 : index
    %3 = vector.load %arg3[%c0_3, %c0_4] : memref<1x256xf32, #tpu.memory_space<vmem>>, vector<1x256xf32>
    %4 = vector.broadcast %3 : vector<1x256xf32> to vector<8x256xf32>
    %5 = arith.addf %2, %4 : vector<8x256xf32>
    %cst_5 = arith.constant 0.000000e+00 : f32
    %6 = vector.broadcast %cst_5 : f32 to vector<8x256xf32>
    %7 = arith.maximumf %5, %6 : vector<8x256xf32>
    %c0_6 = arith.constant 0 : index
    %c0_7 = arith.constant 0 : index
    %8 = vector.load %arg4[%c0_6, %c0_7] : memref<256x256xf32, #tpu.memory_space<vmem>>, vector<256x256xf32>
    %cst_8 = arith.constant dense<0.000000e+00> : vector<8x256xf32>
    %9 = tpu.matmul %7, %8, %cst_8 {dimension_numbers = #tpu.dot_dimension_numbers<[1], [0], [0], [1], [0, 0, 1, 1], [], []>} : vector<8x256xf32>, vector<256x256xf32>, vector<8x256xf32> -> vector<8x256xf32>
    %c0_9 = arith.constant 0 : index
    %c0_10 = arith.constant 0 : index
    %10 = vector.load %arg5[%c0_9, %c0_10] : memref<1x256xf32, #tpu.memory_space<vmem>>, vector<1x256xf32>
    %11 = vector.broadcast %10 : vector<1x256xf32> to vector<8x256xf32>
    %12 = arith.addf %9, %11 : vector<8x256xf32>
    %cst_11 = arith.constant 0.000000e+00 : f32
    %13 = vector.broadcast %cst_11 : f32 to vector<8x256xf32>
    %14 = arith.maximumf %12, %13 : vector<8x256xf32>
    %c0_12 = arith.constant 0 : index
    %c0_13 = arith.constant 0 : index
    %15 = vector.load %arg6[%c0_12, %c0_13] : memref<256x256xf32, #tpu.memory_space<vmem>>, vector<256x256xf32>
    %cst_14 = arith.constant dense<0.000000e+00> : vector<8x256xf32>
    %16 = tpu.matmul %14, %15, %cst_14 {dimension_numbers = #tpu.dot_dimension_numbers<[1], [0], [0], [1], [0, 0, 1, 1], [], []>} : vector<8x256xf32>, vector<256x256xf32>, vector<8x256xf32> -> vector<8x256xf32>
    %c0_15 = arith.constant 0 : index
    %c0_16 = arith.constant 0 : index
    %17 = vector.load %arg8[%c0_15, %c0_16] : memref<8x256xf32, #tpu.memory_space<vmem>>, vector<8x256xf32>
    tpu.vector_store %arg8[%c0_15, %c0_16], %16 {strides = array<i32>} : memref<8x256xf32, #tpu.memory_space<vmem>>, vector<8x256xf32>,
    %18 = arith.negf %16 : vector<8x256xf32>
    %19 = math.exp %18 : vector<8x256xf32>
    %cst_17 = arith.constant 1.000000e+00 : f32
    %20 = vector.broadcast %cst_17 : f32 to vector<8x256xf32>
    %21 = arith.addf %20, %19 : vector<8x256xf32>
    %22 = arith.divf %20, %21 : vector<8x256xf32>
    %c0_18 = arith.constant 0 : index
    %c0_19 = arith.constant 0 : index
    %23 = vector.load %arg7[%c0_18, %c0_19] : memref<8x256xf32, #tpu.memory_space<vmem>>, vector<8x256xf32>
    tpu.vector_store %arg7[%c0_18, %c0_19], %22 {strides = array<i32>} : memref<8x256xf32, #tpu.memory_space<vmem>>, vector<8x256xf32>,
    return
  }
  func.func @transform_0(%arg0: i32) -> (i32, i32) {
    %c0_i32 = arith.constant 0 : i32
    %c0_i32_0 = arith.constant 0 : i32
    return %arg0, %c0_i32 : i32, i32
  }
  func.func @transform_1(%arg0: i32) -> (i32, i32) {
    %c0_i32 = arith.constant 0 : i32
    %c0_i32_0 = arith.constant 0 : i32
    %c0_i32_1 = arith.constant 0 : i32
    return %c0_i32, %c0_i32_0 : i32, i32
  }
  func.func @transform_2(%arg0: i32) -> (i32, i32) {
    %c0_i32 = arith.constant 0 : i32
    %c0_i32_0 = arith.constant 0 : i32
    %c0_i32_1 = arith.constant 0 : i32
    return %c0_i32, %c0_i32_0 : i32, i32
  }
  func.func @transform_3(%arg0: i32) -> (i32, i32) {
    %c0_i32 = arith.constant 0 : i32
    %c0_i32_0 = arith.constant 0 : i32
    %c0_i32_1 = arith.constant 0 : i32
    return %c0_i32, %c0_i32_0 : i32, i32
  }
  func.func @transform_4(%arg0: i32) -> (i32, i32) {
    %c0_i32 = arith.constant 0 : i32
    %c0_i32_0 = arith.constant 0 : i32
    %c0_i32_1 = arith.constant 0 : i32
    return %c0_i32, %c0_i32_0 : i32, i32
  }
  func.func @transform_5(%arg0: i32) -> (i32, i32) {
    %c0_i32 = arith.constant 0 : i32
    %c0_i32_0 = arith.constant 0 : i32
    %c0_i32_1 = arith.constant 0 : i32
    return %c0_i32, %c0_i32_0 : i32, i32
  }
  func.func @transform_6(%arg0: i32) -> (i32, i32) {
    %c0_i32 = arith.constant 0 : i32
    %c0_i32_0 = arith.constant 0 : i32
    return %arg0, %c0_i32 : i32, i32
  }
  func.func @transform_7(%arg0: i32) -> (i32, i32) {
    %c0_i32 = arith.constant 0 : i32
    %c0_i32_0 = arith.constant 0 : i32
    return %arg0, %c0_i32 : i32, i32
  }
}

</mosaic_0001>

<llo_original>
// kernel: tpu_custom_call.1
$region0: #{tpu_custom_call.1}
  #allocation0 [shape = 'u32[]', space=smem, size = 0x4, offset = 0x4, fixed_abs, tag = 'smem constant byte address 0x4 - core index']
  #allocation1 [shape = 'u32[144,128]{1,0:T(1,128)}', space=vmem, size = 0x12000, scoped, tag = 'internal scratch']
  %s0 = inlined_call_operand.hbm [shape: f32[16,1836], index: 0, kind: input, shape index: {}]
  %s1 = inlined_call_operand.hbm [shape: f32[1836,256], index: 1, kind: input, shape index: {}]
  %s2 = inlined_call_operand.hbm [shape: f32[1,256], index: 2, kind: input, shape index: {}]
  %s3 = inlined_call_operand.hbm [shape: f32[256,256], index: 3, kind: input, shape index: {}]
  %s4 = inlined_call_operand.hbm [shape: f32[1,256], index: 4, kind: input, shape index: {}]
  %s5 = inlined_call_operand.hbm [shape: f32[256,256], index: 5, kind: input, shape index: {}]
  %s6 = inlined_call_operand.hbm [shape: f32[16,256], index: 6, kind: output, shape index: {0}]
  %s7 = inlined_call_operand.hbm [shape: f32[16,256], index: 7, kind: output, shape index: {1}]
  %8 = xla_tuple %s6, %s7
  %s9 = sld [smem:[#allocation0]]
  $region89: #{tpu_custom_call.1} parent=0
    _
  %s11 = ssub.s32 1, %s9
  %s12 = scalar_select 0, %s11, %s9
  $region1: #{tpu_custom_call.1} parent=0
    #allocation2 [shape = 'u8[122880]{0}', space=vmem, size = 0x1e000, scoped, tag = 'input window, operand 0']
    #allocation3 [shape = 's32[2]{0}', space=sflag, size = 0x8, scoped, tag = 'scoped memory for tpu_custom_call.1']
    #allocation4 [shape = 's32[2]{0}', space=sflag, size = 0x8, scoped, tag = 'scoped memory for tpu_custom_call.1']
    #allocation5 [shape = 'u8[1884160]{0}', space=vmem, size = 0x1cc000, scoped, tag = 'input window, operand 1, single buffered']
    #allocation6 [shape = 's32[1]{0}', space=sflag, size = 0x4, scoped, tag = 'scoped memory for tpu_custom_call.1']
    #allocation7 [shape = 'u8[1024]{0}', space=vmem, size = 0x400, scoped, tag = 'input window, operand 2, single buffered']
    #allocation8 [shape = 'u8[262144]{0}', space=vmem, size = 0x40000, scoped, tag = 'input window, operand 3, single buffered']
    #allocation9 [shape = 's32[1]{0}', space=sflag, size = 0x4, scoped, tag = 'scoped memory for tpu_custom_call.1']
    #allocation10 [shape = 'u8[1024]{0}', space=vmem, size = 0x400, scoped, tag = 'input window, operand 4, single buffered']
    #allocation11 [shape = 'u8[262144]{0}', space=vmem, size = 0x40000, scoped, tag = 'input window, operand 5, single buffered']
    #allocation12 [shape = 's32[1]{0}', space=sflag, size = 0x4, scoped, tag = 'scoped memory for tpu_custom_call.1']
    #allocation13 [shape = 'u8[16384]{0}', space=vmem, size = 0x4000, scoped, tag = 'output window, operand 0']
    #allocation14 [shape = 'u8[16384]{0}', space=vmem, size = 0x4000, scoped, tag = 'output window, operand 1']
    #allocation15 [shape = 's32[2]{0}', space=sflag, size = 0x8, scoped, tag = 'scoped memory for tpu_custom_call.1']
    %13 = vsyncpa [#allocation3], 0
    %s14 = scalar_lea.sflag [#allocation3], 1
    %15 = vsyncpa %s14, 0
    %16 = vsyncpa [#allocation6], 0
    %17 = vsyncpa [#allocation9], 0
    %18 = vsyncpa [#allocation12], 0
    %19 = vsyncpa [#allocation4], 0
    %s20 = scalar_lea.sflag [#allocation4], 1
    %21 = vsyncpa %s20, 0
    %22 = vsyncpa [#allocation15], 0
    %s23 = scalar_lea.sflag [#allocation15], 1
    %24 = vsyncpa %s23, 0
    loop: start=0, step=1, limit=4
    $region2: #{tpu_custom_call.1} parent=1 // loop_pre_header
      _
    $region3: #{tpu_custom_call.1} parent=1 // loop_header
      %s26 = sphi 0, %s30
      %p27 = scmp.ge.s32.totalorder %s26, 4
      %s36 = sphi 0, %s38
      %s39 = sphi 0, %s36
      %s40 = sphi 0, %s39
      %s56 = sphi 0, %s40
      %s60 = sphi 0, %s60
      %s62 = sphi 0, %s60
      %s63 = sphi 0, %s62
      %s77 = sphi 0, %s63
      %s81 = sphi 0, %s81
      %s83 = sphi 0, %s81
      %s84 = sphi 0, %s83
      %s98 = sphi 0, %s84
      %s102 = sphi 0, %s102
      %s104 = sphi 0, %s102
      %s105 = sphi 0, %s104
      %s119 = sphi 0, %s105
      %s123 = sphi 0, %s123
      %s125 = sphi 0, %s123
      %s126 = sphi 0, %s125
      %s140 = sphi 0, %s126
      %s144 = sphi 0, %s144
      %s146 = sphi 0, %s144
      %s147 = sphi 0, %s146
      %s161 = sphi 0, %s147
      %s167 = sphi 0, %s169
      %s170 = sphi 0, %s167
      %s171 = sphi 0, %s170
      %s187 = sphi 0, %s171
      %s193 = sphi 0, %s195
      %s196 = sphi 0, %s193
      %s197 = sphi 0, %s196
      %s213 = sphi 0, %s197
    $region4: #{tpu_custom_call.1} parent=1 // loop_header_branch
      %29 = sbr.rel (%p27) target = $region8
    $region5: #{tpu_custom_call.1} parent=1 // loop_body
      %s31 = ssub.s32 %s26, 1
      %s32 = ssub.s32 %s26, 2
      %s33 = sadd.s32 %s26, 1
      %s34 = ssub.s32 %s26, %s33
      %p35 = scmp.eq.s32.totalorder %s34, 0
      %s37 = sadd.s32 %s36, 1
      %s38 = scalar_select %p35, %s36, %s37
      %p41 = pneg %p35
      %p42 = scmp.eq.s32.totalorder %s26, 1
      %p43 = por %p41, %p42
      %p44 = scmp.ne.s32.totalorder %s36, %s39
      %p45 = scmp.eq.s32.totalorder %s26, 0
      %p46 = por %p44, %p45
      %p47 = scmp.ne.s32.totalorder %s36, %s39
      %p48 = scmp.eq.s32.totalorder %s31, 1
      %p49 = por %p47, %p48
      %p50 = scmp.ne.s32.totalorder %s39, %s40
      %p51 = scmp.eq.s32.totalorder %s31, 0
      %p52 = por %p50, %p51
      %p53 = scmp.ne.s32.totalorder %s39, %s40
      %p54 = scmp.eq.s32.totalorder %s32, 1
      %p55 = por %p53, %p54
      %p57 = scmp.ne.s32.totalorder %s40, %s56
      %p58 = scmp.eq.s32.totalorder %s32, 0
      %p59 = por %p57, %p58
      %s61 = sadd.s32 %s60, 1
      %p64 = scmp.eq.s32.totalorder %s26, 1
      %p65 = scmp.ne.s32.totalorder %s60, %s62
      %p66 = scmp.eq.s32.totalorder %s26, 0
      %p67 = por %p65, %p66
      %p68 = scmp.ne.s32.totalorder %s60, %s62
      %p69 = scmp.eq.s32.totalorder %s31, 1
      %p70 = por %p68, %p69
      %p71 = scmp.ne.s32.totalorder %s62, %s63
      %p72 = scmp.eq.s32.totalorder %s31, 0
      %p73 = por %p71, %p72
      %p74 = scmp.ne.s32.totalorder %s62, %s63
      %p75 = scmp.eq.s32.totalorder %s32, 1
      %p76 = por %p74, %p75
      %p78 = scmp.ne.s32.totalorder %s63, %s77
      %p79 = scmp.eq.s32.totalorder %s32, 0
      %p80 = por %p78, %p79
      %s82 = sadd.s32 %s81, 1
      %p85 = scmp.eq.s32.totalorder %s26, 1
      %p86 = scmp.ne.s32.totalorder %s81, %s83
      %p87 = scmp.eq.s32.totalorder %s26, 0
      %p88 = por %p86, %p87
      %p89 = scmp.ne.s32.totalorder %s81, %s83
      %p90 = scmp.eq.s32.totalorder %s31, 1
      %p91 = por %p89, %p90
      %p92 = scmp.ne.s32.totalorder %s83, %s84
      %p93 = scmp.eq.s32.totalorder %s31, 0
      %p94 = por %p92, %p93
      %p95 = scmp.ne.s32.totalorder %s83, %s84
      %p96 = scmp.eq.s32.totalorder %s32, 1
      %p97 = por %p95, %p96
      %p99 = scmp.ne.s32.totalorder %s84, %s98
      %p100 = scmp.eq.s32.totalorder %s32, 0
      %p101 = por %p99, %p100
      %s103 = sadd.s32 %s102, 1
      %p106 = scmp.eq.s32.totalorder %s26, 1
      %p107 = scmp.ne.s32.totalorder %s102, %s104
      %p108 = scmp.eq.s32.totalorder %s26, 0
      %p109 = por %p107, %p108
      %p110 = scmp.ne.s32.totalorder %s102, %s104
      %p111 = scmp.eq.s32.totalorder %s31, 1
      %p112 = por %p110, %p111
      %p113 = scmp.ne.s32.totalorder %s104, %s105
      %p114 = scmp.eq.s32.totalorder %s31, 0
      %p115 = por %p113, %p114
      %p116 = scmp.ne.s32.totalorder %s104, %s105
      %p117 = scmp.eq.s32.totalorder %s32, 1
      %p118 = por %p116, %p117
      %p120 = scmp.ne.s32.totalorder %s105, %s119
      %p121 = scmp.eq.s32.totalorder %s32, 0
      %p122 = por %p120, %p121
      %s124 = sadd.s32 %s123, 1
      %p127 = scmp.eq.s32.totalorder %s26, 1
      %p128 = scmp.ne.s32.totalorder %s123, %s125
      %p129 = scmp.eq.s32.totalorder %s26, 0
      %p130 = por %p128, %p129
      %p131 = scmp.ne.s32.totalorder %s123, %s125
      %p132 = scmp.eq.s32.totalorder %s31, 1
      %p133 = por %p131, %p132
      %p134 = scmp.ne.s32.totalorder %s125, %s126
      %p135 = scmp.eq.s32.totalorder %s31, 0
      %p136 = por %p134, %p135
      %p137 = scmp.ne.s32.totalorder %s125, %s126
      %p138 = scmp.eq.s32.totalorder %s32, 1
      %p139 = por %p137, %p138
      %p141 = scmp.ne.s32.totalorder %s126, %s140
      %p142 = scmp.eq.s32.totalorder %s32, 0
      %p143 = por %p141, %p142
      %s145 = sadd.s32 %s144, 1
      %p148 = scmp.eq.s32.totalorder %s26, 1
      %p149 = scmp.ne.s32.totalorder %s144, %s146
      %p150 = scmp.eq.s32.totalorder %s26, 0
      %p151 = por %p149, %p150
      %p152 = scmp.ne.s32.totalorder %s144, %s146
      %p153 = scmp.eq.s32.totalorder %s31, 1
      %p154 = por %p152, %p153
      %p155 = scmp.ne.s32.totalorder %s146, %s147
      %p156 = scmp.eq.s32.totalorder %s31, 0
      %p157 = por %p155, %p156
      %p158 = scmp.ne.s32.totalorder %s146, %s147
      %p159 = scmp.eq.s32.totalorder %s32, 1
      %p160 = por %p158, %p159
      %p162 = scmp.ne.s32.totalorder %s147, %s161
      %p163 = scmp.eq.s32.totalorder %s32, 0
      %p164 = por %p162, %p163
      %s165 = ssub.s32 %s26, %s33
      %p166 = scmp.eq.s32.totalorder %s165, 0
      %s168 = sadd.s32 %s167, 1
      %s169 = scalar_select %p166, %s167, %s168
      %p172 = pneg %p166
      %p173 = scmp.eq.s32.totalorder %s26, 1
      %p174 = por %p172, %p173
      %p175 = scmp.ne.s32.totalorder %s167, %s170
      %p176 = scmp.eq.s32.totalorder %s26, 0
      %p177 = por %p175, %p176
      %p178 = scmp.ne.s32.totalorder %s167, %s170
      %p179 = scmp.eq.s32.totalorder %s31, 1
      %p180 = por %p178, %p179
      %p181 = scmp.ne.s32.totalorder %s170, %s171
      %p182 = scmp.eq.s32.totalorder %s31, 0
      %p183 = por %p181, %p182
      %p184 = scmp.ne.s32.totalorder %s170, %s171
      %p185 = scmp.eq.s32.totalorder %s32, 1
      %p186 = por %p184, %p185
      %p188 = scmp.ne.s32.totalorder %s171, %s187
      %p189 = scmp.eq.s32.totalorder %s32, 0
      %p190 = por %p188, %p189
      %s191 = ssub.s32 %s26, %s33
      %p192 = scmp.eq.s32.totalorder %s191, 0
      %s194 = sadd.s32 %s193, 1
      %s195 = scalar_select %p192, %s193, %s194
      %p198 = pneg %p192
      %p199 = scmp.eq.s32.totalorder %s26, 1
      %p200 = por %p198, %p199
      %p201 = scmp.ne.s32.totalorder %s193, %s196
      %p202 = scmp.eq.s32.totalorder %s26, 0
      %p203 = por %p201, %p202
      %p204 = scmp.ne.s32.totalorder %s193, %s196
      %p205 = scmp.eq.s32.totalorder %s31, 1
      %p206 = por %p204, %p205
      %p207 = scmp.ne.s32.totalorder %s196, %s197
      %p208 = scmp.eq.s32.totalorder %s31, 0
      %p209 = por %p207, %p208
      %p210 = scmp.ne.s32.totalorder %s196, %s197
      %p211 = scmp.eq.s32.totalorder %s32, 1
      %p212 = por %p210, %p211
      %p214 = scmp.ne.s32.totalorder %s197, %s213
      %p215 = scmp.eq.s32.totalorder %s32, 0
      %p216 = por %p214, %p215
      %p217 = scmp.le.s32.totalorder 1, %s26
      %p218 = scmp.lt.s32.totalorder %s26, 3
      %p219 = pnand %p217, %p218
      %p220 = pneg %p219
      // Predicated region
      $region9: #{tpu_custom_call.1} parent=5 // pred_check
        _
      $region10: #{tpu_custom_call.1} parent=5 // pred_check_branch
        %222 = sbr.rel (%p219) target = $region12
      $region11: #{tpu_custom_call.1} parent=5 // pred_region
        %s223 = ssub.s32 %s26, 1
        // Predicated region
        $region13: #{tpu_custom_call.1} parent=11 // pred_check
          %p224 = pneg %p73
        $region14: #{tpu_custom_call.1} parent=11 // pred_check_branch
          %226 = sbr.rel (%p224) target = $region16
        $region15: #{tpu_custom_call.1} parent=11 // pred_region
          %s228 = ssub.s32 58880, 58880
          %229 = vsyncadd [#allocation6], %s228
          %s230 = sshll.u32 [#allocation5], 4
          %s231 = int_to_ptr.vmem [resolvable:$true] %s230
          %236 = dma.hbm_to_vmem [thread:$0]  %s1, 58880, %s231, [#allocation6], 256, 256, 16
        $region16: #{tpu_custom_call.1} parent=11 // pred_fallthru
          _
        // Predicated region
        $region17: #{tpu_custom_call.1} parent=11 // pred_check
          %p237 = pneg %p94
        $region18: #{tpu_custom_call.1} parent=11 // pred_check_branch
          %239 = sbr.rel (%p237) target = $region20
        $region19: #{tpu_custom_call.1} parent=11 // pred_region
          %s241 = ssub.s32 32, 32
          %242 = vsyncadd [#allocation6], %s241
          %s244 = sshll.u32 [#allocation7], 4
          %s245 = int_to_ptr.vmem [resolvable:$true] %s244
          %247 = dma.hbm_to_vmem [thread:$0]  %s2, 32, %s245, [#allocation6]
        $region20: #{tpu_custom_call.1} parent=11 // pred_fallthru
          _
        // Predicated region
        $region21: #{tpu_custom_call.1} parent=11 // pred_check
          %p248 = pneg %p115
        $region22: #{tpu_custom_call.1} parent=11 // pred_check_branch
          %250 = sbr.rel (%p248) target = $region24
        $region23: #{tpu_custom_call.1} parent=11 // pred_region
          %s252 = ssub.s32 8192, 8192
          %253 = vsyncadd [#allocation9], %s252
          %s254 = sshll.u32 [#allocation8], 4
          %s255 = int_to_ptr.vmem [resolvable:$true] %s254
          %260 = dma.hbm_to_vmem [thread:$0]  %s3, 8192, %s255, [#allocation9], 256, 256, 16
        $region24: #{tpu_custom_call.1} parent=11 // pred_fallthru
          _
        // Predicated region
        $region25: #{tpu_custom_call.1} parent=11 // pred_check
          %p261 = pneg %p136
        $region26: #{tpu_custom_call.1} parent=11 // pred_check_branch
          %263 = sbr.rel (%p261) target = $region28
        $region27: #{tpu_custom_call.1} parent=11 // pred_region
          %s265 = ssub.s32 32, 32
          %266 = vsyncadd [#allocation9], %s265
          %s268 = sshll.u32 [#allocation10], 4
          %s269 = int_to_ptr.vmem [resolvable:$true] %s268
          %271 = dma.hbm_to_vmem [thread:$0]  %s4, 32, %s269, [#allocation9]
        $region28: #{tpu_custom_call.1} parent=11 // pred_fallthru
          _
        // Predicated region
        $region29: #{tpu_custom_call.1} parent=11 // pred_check
          %p272 = pneg %p157
        $region30: #{tpu_custom_call.1} parent=11 // pred_check_branch
          %274 = sbr.rel (%p272) target = $region32
        $region31: #{tpu_custom_call.1} parent=11 // pred_region
          %s276 = ssub.s32 8192, 8192
          %277 = vsyncadd [#allocation12], %s276
          %s278 = sshll.u32 [#allocation11], 4
          %s279 = int_to_ptr.vmem [resolvable:$true] %s278
          %284 = dma.hbm_to_vmem [thread:$0]  %s5, 8192, %s279, [#allocation12], 256, 256, 16
        $region32: #{tpu_custom_call.1} parent=11 // pred_fallthru
          _
      $region12: #{tpu_custom_call.1} parent=5 // pred_fallthru
        _
      %p285 = scmp.lt.s32.totalorder %s26, 2
      // Predicated region
      $region33: #{tpu_custom_call.1} parent=5 // pred_check
        %p286 = pneg %p285
      $region34: #{tpu_custom_call.1} parent=5 // pred_check_branch
        %288 = sbr.rel (%p286) target = $region36
      $region35: #{tpu_custom_call.1} parent=5 // pred_region
        // Predicated region
        $region37: #{tpu_custom_call.1} parent=35 // pred_check
          %p289 = pneg %p46
        $region38: #{tpu_custom_call.1} parent=35 // pred_check_branch
          %291 = sbr.rel (%p289) target = $region40
        $region39: #{tpu_custom_call.1} parent=35 // pred_region
          %s292 = sand.u32 %s36, 1
          %s293 = scalar_lea.sflag [#allocation3], %s292
          %s294 = sand.u32 %s36, 1
          %s295 = smul.addr %s294, 120
          %s296 = scalar_lea.vmem [#allocation2], %s295
          %s298 = ssub.s32 1920, 1920
          %299 = vsyncadd %s293, %s298
          %s300 = smul.addr %s26, 15
          %s301 = smul.addr %s300, 128
          %s302 = scalar_lea.hbm %s0, %s301
          %s304 = sshll.u32 %s296, 4
          %s305 = int_to_ptr.vmem [resolvable:$true] %s304
          %307 = dma.hbm_to_vmem [thread:$0]  %s302, 1920, %s305, %s293
        $region40: #{tpu_custom_call.1} parent=35 // pred_fallthru
          _
      $region36: #{tpu_custom_call.1} parent=5 // pred_fallthru
        _
      %p308 = scmp.le.s32.totalorder 1, %s26
      %p309 = scmp.lt.s32.totalorder %s26, 3
      %p310 = pnand %p308, %p309
      %p311 = pneg %p310
      // Predicated region
      $region41: #{tpu_custom_call.1} parent=5 // pred_check
        _
      $region42: #{tpu_custom_call.1} parent=5 // pred_check_branch
        %313 = sbr.rel (%p310) target = $region44
      $region43: #{tpu_custom_call.1} parent=5 // pred_region
        %s314 = ssub.s32 %s26, 1
        %s315 = sand.u32 %s39, 1
        %s316 = scalar_lea.sflag [#allocation3], %s315
        %s317 = sand.u32 %s39, 1
        %s318 = smul.addr %s317, 120
        %s319 = scalar_lea.vmem [#allocation2], %s318
        // Predicated region
        $region45: #{tpu_custom_call.1} parent=43 // pred_check
          %p320 = pneg %p52
        $region46: #{tpu_custom_call.1} parent=43 // pred_check_branch
          %322 = sbr.rel (%p320) target = $region48
        $region47: #{tpu_custom_call.1} parent=43 // pred_region
          %323 = dma.done %s316, 1920
        $region48: #{tpu_custom_call.1} parent=43 // pred_fallthru
          _
        // Predicated region
        $region49: #{tpu_custom_call.1} parent=43 // pred_check
          %p324 = pneg %p73
        $region50: #{tpu_custom_call.1} parent=43 // pred_check_branch
          %326 = sbr.rel (%p324) target = $region52
        $region51: #{tpu_custom_call.1} parent=43 // pred_region
          %327 = dma.done [#allocation6], 58880
        $region52: #{tpu_custom_call.1} parent=43 // pred_fallthru
          _
        // Predicated region
        $region53: #{tpu_custom_call.1} parent=43 // pred_check
          %p328 = pneg %p94
        $region54: #{tpu_custom_call.1} parent=43 // pred_check_branch
          %330 = sbr.rel (%p328) target = $region56
        $region55: #{tpu_custom_call.1} parent=43 // pred_region
          %331 = dma.done [#allocation6], 32
        $region56: #{tpu_custom_call.1} parent=43 // pred_fallthru
          _
        // Predicated region
        $region57: #{tpu_custom_call.1} parent=43 // pred_check
          %p332 = pneg %p115
        $region58: #{tpu_custom_call.1} parent=43 // pred_check_branch
          %334 = sbr.rel (%p332) target = $region60
        $region59: #{tpu_custom_call.1} parent=43 // pred_region
          %335 = dma.done [#allocation9], 8192
        $region60: #{tpu_custom_call.1} parent=43 // pred_fallthru
          _
        // Predicated region
        $region61: #{tpu_custom_call.1} parent=43 // pred_check
          %p336 = pneg %p136
        $region62: #{tpu_custom_call.1} parent=43 // pred_check_branch
          %338 = sbr.rel (%p336) target = $region64
        $region63: #{tpu_custom_call.1} parent=43 // pred_region
          %339 = dma.done [#allocation9], 32
        $region64: #{tpu_custom_call.1} parent=43 // pred_fallthru
          _
        // Predicated region
        $region65: #{tpu_custom_call.1} parent=43 // pred_check
          %p340 = pneg %p157
        $region66: #{tpu_custom_call.1} parent=43 // pred_check_branch
          %342 = sbr.rel (%p340) target = $region68
        $region67: #{tpu_custom_call.1} parent=43 // pred_region
          %343 = dma.done [#allocation12], 8192
        $region68: #{tpu_custom_call.1} parent=43 // pred_fallthru
          _
        %s344 = sand.u32 %s39, 1
        %s345 = scalar_lea.sflag [#allocation3], %s344
        %s346 = sand.u32 %s39, 1
        %s347 = smul.addr %s346, 120
        %s348 = scalar_lea.vmem [#allocation2], %s347
        %p349 = pneg %p52
        %p350 = pneg %p49
        %p351 = pneg %p73
        %p352 = pneg %p70
        %p353 = pneg %p94
        %p354 = pneg %p91
        %p355 = pneg %p115
        %p356 = pneg %p112
        %p357 = pneg %p136
        %p358 = pneg %p133
        %p359 = pneg %p157
        %p360 = pneg %p154
        %p361 = pneg %p183
        %p362 = pneg %p180
        %s363 = sand.u32 %s170, 1
        %s364 = scalar_lea.sflag [#allocation4], %s363
        %s365 = sand.u32 %s170, 1
        %s366 = smul.addr %s365, 16
        %s367 = scalar_lea.vmem [#allocation13], %s366
        %p368 = pneg %p209
        %p369 = pneg %p206
        %s370 = sand.u32 %s196, 1
        %s371 = scalar_lea.sflag [#allocation15], %s370
        %s372 = sand.u32 %s196, 1
        %s373 = smul.addr %s372, 16
        %s374 = scalar_lea.vmem [#allocation14], %s373
        %v375 = vld [vmem:[%s319] sm:$0xff]
        %v376 = vld [vmem:[%s319 + $0x8] sm:$0xff]
        %v377 = vld [vmem:[%s319 + $0x10] sm:$0xff]
        %v378 = vld [vmem:[%s319 + $0x18] sm:$0xff]
        %v379 = vld [vmem:[%s319 + $0x20] sm:$0xff]
        %v380 = vld [vmem:[%s319 + $0x28] sm:$0xff]
        %v381 = vld [vmem:[%s319 + $0x30] sm:$0xff]
        %v382 = vld [vmem:[%s319 + $0x38] sm:$0xff]
        %v383 = vld [vmem:[%s319 + $0x40] sm:$0xff]
        %v384 = vld [vmem:[%s319 + $0x48] sm:$0xff]
        %v385 = vld [vmem:[%s319 + $0x50] sm:$0xff]
        %v386 = vld [vmem:[%s319 + $0x58] sm:$0xff]
        %v387 = vld [vmem:[%s319 + $0x60] sm:$0xff]
        %v388 = vld [vmem:[%s319 + $0x68] sm:$0xff]
        %v389 = vld [vmem:[%s319 + $0x70] sm:$0xff]
        %v390 = vld [vmem:[#allocation5] sm:$0xff]
        %v391 = vld [vmem:[#allocation5 + $0x8] sm:$0xff]
        %v392 = vld [vmem:[#allocation5 + $0x10] sm:$0xff]
        %v393 = vld [vmem:[#allocation5 + $0x18] sm:$0xff]
        %v394 = vld [vmem:[#allocation5 + $0x20] sm:$0xff]
        %v395 = vld [vmem:[#allocation5 + $0x28] sm:$0xff]
        %v396 = vld [vmem:[#allocation5 + $0x30] sm:$0xff]
        %v397 = vld [vmem:[#allocation5 + $0x38] sm:$0xff]
        %v398 = vld [vmem:[#allocation5 + $0x40] sm:$0xff]
        %v399 = vld [vmem:[#allocation5 + $0x48] sm:$0xff]
        %v400 = vld [vmem:[#allocation5 + $0x50] sm:$0xff]
        %v401 = vld [vmem:[#allocation5 + $0x58] sm:$0xff]
        %v402 = vld [vmem:[#allocation5 + $0x60] sm:$0xff]
        %v403 = vld [vmem:[#allocation5 + $0x68] sm:$0xff]
        %v404 = vld [vmem:[#allocation5 + $0x70] sm:$0xff]
        %v405 = vld [vmem:[#allocation5 + $0x78] sm:$0xff]
        %v406 = vld [vmem:[#allocation5 + $0x80] sm:$0xff]
        %v407 = vld [vmem:[#allocation5 + $0x88] sm:$0xff]
        %v408 = vld [vmem:[#allocation5 + $0x90] sm:$0xff]
        %v409 = vld [vmem:[#allocation5 + $0x98] sm:$0xff]
        %v410 = vld [vmem:[#allocation5 + $0xa0] sm:$0xff]
        %v411 = vld [vmem:[#allocation5 + $0xa8] sm:$0xff]
        %v412 = vld [vmem:[#allocation5 + $0xb0] sm:$0xff]
        %v413 = vld [vmem:[#allocation5 + $0xb8] sm:$0xff]
        %v414 = vld [vmem:[#allocation5 + $0xc0] sm:$0xff]
        %v415 = vld [vmem:[#allocation5 + $0xc8] sm:$0xff]
        %v416 = vld [vmem:[#allocation5 + $0xd0] sm:$0xff]
        %v417 = vld [vmem:[#allocation5 + $0xd8] sm:$0xff]
        %v418 = vld [vmem:[#allocation5 + $0xe0] sm:$0xff]
        %v419 = vld [vmem:[#allocation5 + $0xe8] sm:$0xff]
        %v420 = vld [vmem:[#allocation5 + $0xf0] sm:$0xff]
        %v421 = vld [vmem:[#allocation5 + $0xf8] sm:$0xff]
        %v422 = vld [vmem:[#allocation5 + $0x100] sm:$0xff]
        %v423 = vld [vmem:[#allocation5 + $0x108] sm:$0xff]
        %v424 = vld [vmem:[#allocation5 + $0x110] sm:$0xff]
        %v425 = vld [vmem:[#allocation5 + $0x118] sm:$0xff]
        %v426 = vld [vmem:[#allocation5 + $0x120] sm:$0xff]
        %v427 = vld [vmem:[#allocation5 + $0x128] sm:$0xff]
        %v428 = vld [vmem:[#allocation5 + $0x130] sm:$0xff]
        %v429 = vld [vmem:[#allocation5 + $0x138] sm:$0xff]
        %v430 = vld [vmem:[#allocation5 + $0x140] sm:$0xff]
        %v431 = vld [vmem:[#allocation5 + $0x148] sm:$0xff]
        %v432 = vld [vmem:[#allocation5 + $0x150] sm:$0xff]
        %v433 = vld [vmem:[#allocation5 + $0x158] sm:$0xff]
        %v434 = vld [vmem:[#allocation5 + $0x160] sm:$0xff]
        %v435 = vld [vmem:[#allocation5 + $0x168] sm:$0xff]
        %v436 = vld [vmem:[#allocation5 + $0x170] sm:$0xff]
        %v437 = vld [vmem:[#allocation5 + $0x178] sm:$0xff]
        %v438 = vld [vmem:[#allocation5 + $0x180] sm:$0xff]
        %v439 = vld [vmem:[#allocation5 + $0x188] sm:$0xff]
        %v440 = vld [vmem:[#allocation5 + $0x190] sm:$0xff]
        %v441 = vld [vmem:[#allocation5 + $0x198] sm:$0xff]
        %v442 = vld [vmem:[#allocation5 + $0x1a0] sm:$0xff]
        %v443 = vld [vmem:[#allocation5 + $0x1a8] sm:$0xff]
        %v444 = vld [vmem:[#allocation5 + $0x1b0] sm:$0xff]
        %v445 = vld [vmem:[#allocation5 + $0x1b8] sm:$0xff]
        %v446 = vld [vmem:[#allocation5 + $0x1c0] sm:$0xff]
        %v447 = vld [vmem:[#allocation5 + $0x1c8] sm:$0xff]
        %v448 = vld [vmem:[#allocation5 + $0x1d0] sm:$0xff]
        %v449 = vld [vmem:[#allocation5 + $0x1d8] sm:$0xff]
        %v450 = vld [vmem:[#allocation5 + $0x1e0] sm:$0xff]
        %v451 = vld [vmem:[#allocation5 + $0x1e8] sm:$0xff]
        %v452 = vld [vmem:[#allocation5 + $0x1f0] sm:$0xff]
        %v453 = vld [vmem:[#allocation5 + $0x1f8] sm:$0xff]
        %v454 = vld [vmem:[#allocation5 + $0x200] sm:$0xff]
        %v455 = vld [vmem:[#allocation5 + $0x208] sm:$0xff]
        %v456 = vld [vmem:[#allocation5 + $0x210] sm:$0xff]
        %v457 = vld [vmem:[#allocation5 + $0x218] sm:$0xff]
        %v458 = vld [vmem:[#allocation5 + $0x220] sm:$0xff]
        %v459 = vld [vmem:[#allocation5 + $0x228] sm:$0xff]
        %v460 = vld [vmem:[#allocation5 + $0x230] sm:$0xff]
        %v461 = vld [vmem:[#allocation5 + $0x238] sm:$0xff]
        %v462 = vld [vmem:[#allocation5 + $0x240] sm:$0xff]
        %v463 = vld [vmem:[#allocation5 + $0x248] sm:$0xff]
        %v464 = vld [vmem:[#allocation5 + $0x250] sm:$0xff]
        %v465 = vld [vmem:[#allocation5 + $0x258] sm:$0xff]
        %v466 = vld [vmem:[#allocation5 + $0x260] sm:$0xff]
        %v467 = vld [vmem:[#allocation5 + $0x268] sm:$0xff]
        %v468 = vld [vmem:[#allocation5 + $0x270] sm:$0xff]
        %v469 = vld [vmem:[#allocation5 + $0x278] sm:$0xff]
        %v470 = vld [vmem:[#allocation5 + $0x280] sm:$0xff]
        %v471 = vld [vmem:[#allocation5 + $0x288] sm:$0xff]
        %v472 = vld [vmem:[#allocation5 + $0x290] sm:$0xff]
        %v473 = vld [vmem:[#allocation5 + $0x298] sm:$0xff]
        %v474 = vld [vmem:[#allocation5 + $0x2a0] sm:$0xff]
        %v475 = vld [vmem:[#allocation5 + $0x2a8] sm:$0xff]
        %v476 = vld [vmem:[#allocation5 + $0x2b0] sm:$0xff]
        %v477 = vld [vmem:[#allocation5 + $0x2b8] sm:$0xff]
        %v478 = vld [vmem:[#allocation5 + $0x2c0] sm:$0xff]
        %v479 = vld [vmem:[#allocation5 + $0x2c8] sm:$0xff]
        %v480 = vld [vmem:[#allocation5 + $0x2d0] sm:$0xff]
        %v481 = vld [vmem:[#allocation5 + $0x2d8] sm:$0xff]
        %v482 = vld [vmem:[#allocation5 + $0x2e0] sm:$0xff]
        %v483 = vld [vmem:[#allocation5 + $0x2e8] sm:$0xff]
        %v484 = vld [vmem:[#allocation5 + $0x2f0] sm:$0xff]
        %v485 = vld [vmem:[#allocation5 + $0x2f8] sm:$0xff]
        %v486 = vld [vmem:[#allocation5 + $0x300] sm:$0xff]
        %v487 = vld [vmem:[#allocation5 + $0x308] sm:$0xff]
        %v488 = vld [vmem:[#allocation5 + $0x310] sm:$0xff]
        %v489 = vld [vmem:[#allocation5 + $0x318] sm:$0xff]
        %v490 = vld [vmem:[#allocation5 + $0x320] sm:$0xff]
        %v491 = vld [vmem:[#allocation5 + $0x328] sm:$0xff]
        %v492 = vld [vmem:[#allocation5 + $0x330] sm:$0xff]
        %v493 = vld [vmem:[#allocation5 + $0x338] sm:$0xff]
        %v494 = vld [vmem:[#allocation5 + $0x340] sm:$0xff]
        %v495 = vld [vmem:[#allocation5 + $0x348] sm:$0xff]
        %v496 = vld [vmem:[#allocation5 + $0x350] sm:$0xff]
        %v497 = vld [vmem:[#allocation5 + $0x358] sm:$0xff]
        %v498 = vld [vmem:[#allocation5 + $0x360] sm:$0xff]
        %v499 = vld [vmem:[#allocation5 + $0x368] sm:$0xff]
        %v500 = vld [vmem:[#allocation5 + $0x370] sm:$0xff]
        %v501 = vld [vmem:[#allocation5 + $0x378] sm:$0xff]
        %v502 = vld [vmem:[#allocation5 + $0x380] sm:$0xff]
        %v503 = vld [vmem:[#allocation5 + $0x388] sm:$0xff]
        %v504 = vld [vmem:[#allocation5 + $0x390] sm:$0xff]
        %v505 = vld [vmem:[#allocation5 + $0x398] sm:$0xff]
        %v506 = vld [vmem:[#allocation5 + $0x3a0] sm:$0xff]
        %v507 = vld [vmem:[#allocation5 + $0x3a8] sm:$0xff]
        %v508 = vld [vmem:[#allocation5 + $0x3b0] sm:$0xff]
        %v509 = vld [vmem:[#allocation5 + $0x3b8] sm:$0xff]
        %v510 = vld [vmem:[#allocation5 + $0x3c0] sm:$0xff]
        %v511 = vld [vmem:[#allocation5 + $0x3c8] sm:$0xff]
        %v512 = vld [vmem:[#allocation5 + $0x3d0] sm:$0xff]
        %v513 = vld [vmem:[#allocation5 + $0x3d8] sm:$0xff]
        %v514 = vld [vmem:[#allocation5 + $0x3e0] sm:$0xff]
        %v515 = vld [vmem:[#allocation5 + $0x3e8] sm:$0xff]
        %v516 = vld [vmem:[#allocation5 + $0x3f0] sm:$0xff]
        %v517 = vld [vmem:[#allocation5 + $0x3f8] sm:$0xff]
        %v518 = vld [vmem:[#allocation5 + $0x400] sm:$0xff]
        %v519 = vld [vmem:[#allocation5 + $0x408] sm:$0xff]
        %v520 = vld [vmem:[#allocation5 + $0x410] sm:$0xff]
        %v521 = vld [vmem:[#allocation5 + $0x418] sm:$0xff]
        %v522 = vld [vmem:[#allocation5 + $0x420] sm:$0xff]
        %v523 = vld [vmem:[#allocation5 + $0x428] sm:$0xff]
        %v524 = vld [vmem:[#allocation5 + $0x430] sm:$0xff]
        %v525 = vld [vmem:[#allocation5 + $0x438] sm:$0xff]
        %v526 = vld [vmem:[#allocation5 + $0x440] sm:$0xff]
        %v527 = vld [vmem:[#allocation5 + $0x448] sm:$0xff]
        %v528 = vld [vmem:[#allocation5 + $0x450] sm:$0xff]
        %v529 = vld [vmem:[#allocation5 + $0x458] sm:$0xff]
        %v530 = vld [vmem:[#allocation5 + $0x460] sm:$0xff]
        %v531 = vld [vmem:[#allocation5 + $0x468] sm:$0xff]
        %v532 = vld [vmem:[#allocation5 + $0x470] sm:$0xff]
        %v533 = vld [vmem:[#allocation5 + $0x478] sm:$0xff]
        %v534 = vld [vmem:[#allocation5 + $0x480] sm:$0xff]
        %v535 = vld [vmem:[#allocation5 + $0x488] sm:$0xff]
        %v536 = vld [vmem:[#allocation5 + $0x490] sm:$0xff]
        %v537 = vld [vmem:[#allocation5 + $0x498] sm:$0xff]
        %v538 = vld [vmem:[#allocation5 + $0x4a0] sm:$0xff]
        %v539 = vld [vmem:[#allocation5 + $0x4a8] sm:$0xff]
        %v540 = vld [vmem:[#allocation5 + $0x4b0] sm:$0xff]
        %v541 = vld [vmem:[#allocation5 + $0x4b8] sm:$0xff]
        %v542 = vld [vmem:[#allocation5 + $0x4c0] sm:$0xff]
        %v543 = vld [vmem:[#allocation5 + $0x4c8] sm:$0xff]
        %v544 = vld [vmem:[#allocation5 + $0x4d0] sm:$0xff]
        %v545 = vld [vmem:[#allocation5 + $0x4d8] sm:$0xff]
        %v546 = vld [vmem:[#allocation5 + $0x4e0] sm:$0xff]
        %v547 = vld [vmem:[#allocation5 + $0x4e8] sm:$0xff]
        %v548 = vld [vmem:[#allocation5 + $0x4f0] sm:$0xff]
        %v549 = vld [vmem:[#allocation5 + $0x4f8] sm:$0xff]
        %v550 = vld [vmem:[#allocation5 + $0x500] sm:$0xff]
        %v551 = vld [vmem:[#allocation5 + $0x508] sm:$0xff]
        %v552 = vld [vmem:[#allocation5 + $0x510] sm:$0xff]
        %v553 = vld [vmem:[#allocation5 + $0x518] sm:$0xff]
        %v554 = vld [vmem:[#allocation5 + $0x520] sm:$0xff]
        %v555 = vld [vmem:[#allocation5 + $0x528] sm:$0xff]
        %v556 = vld [vmem:[#allocation5 + $0x530] sm:$0xff]
        %v557 = vld [vmem:[#allocation5 + $0x538] sm:$0xff]
        %v558 = vld [vmem:[#allocation5 + $0x540] sm:$0xff]
        %v559 = vld [vmem:[#allocation5 + $0x548] sm:$0xff]
        %v560 = vld [vmem:[#allocation5 + $0x550] sm:$0xff]
        %v561 = vld [vmem:[#allocation5 + $0x558] sm:$0xff]
        %v562 = vld [vmem:[#allocation5 + $0x560] sm:$0xff]
        %v563 = vld [vmem:[#allocation5 + $0x568] sm:$0xff]
        %v564 = vld [vmem:[#allocation5 + $0x570] sm:$0xff]
        %v565 = vld [vmem:[#allocation5 + $0x578] sm:$0xff]
        %v566 = vld [vmem:[#allocation5 + $0x580] sm:$0xff]
        %v567 = vld [vmem:[#allocation5 + $0x588] sm:$0xff]
        %v568 = vld [vmem:[#allocation5 + $0x590] sm:$0xff]
        %v569 = vld [vmem:[#allocation5 + $0x598] sm:$0xff]
        %v570 = vld [vmem:[#allocation5 + $0x5a0] sm:$0xff]
        %v571 = vld [vmem:[#allocation5 + $0x5a8] sm:$0xff]
        %v572 = vld [vmem:[#allocation5 + $0x5b0] sm:$0xff]
        %v573 = vld [vmem:[#allocation5 + $0x5b8] sm:$0xff]
        %v574 = vld [vmem:[#allocation5 + $0x5c0] sm:$0xff]
        %v575 = vld [vmem:[#allocation5 + $0x5c8] sm:$0xff]
        %v576 = vld [vmem:[#allocation5 + $0x5d0] sm:$0xff]
        %v577 = vld [vmem:[#allocation5 + $0x5d8] sm:$0xff]
        %v578 = vld [vmem:[#allocation5 + $0x5e0] sm:$0xff]
        %v579 = vld [vmem:[#allocation5 + $0x5e8] sm:$0xff]
        %v580 = vld [vmem:[#allocation5 + $0x5f0] sm:$0xff]
        %v581 = vld [vmem:[#allocation5 + $0x5f8] sm:$0xff]
        %v582 = vld [vmem:[#allocation5 + $0x600] sm:$0xff]
        %v583 = vld [vmem:[#allocation5 + $0x608] sm:$0xff]
        %v584 = vld [vmem:[#allocation5 + $0x610] sm:$0xff]
        %v585 = vld [vmem:[#allocation5 + $0x618] sm:$0xff]
        %v586 = vld [vmem:[#allocation5 + $0x620] sm:$0xff]
        %v587 = vld [vmem:[#allocation5 + $0x628] sm:$0xff]
        %v588 = vld [vmem:[#allocation5 + $0x630] sm:$0xff]
        %v589 = vld [vmem:[#allocation5 + $0x638] sm:$0xff]
        %v590 = vld [vmem:[#allocation5 + $0x640] sm:$0xff]
        %v591 = vld [vmem:[#allocation5 + $0x648] sm:$0xff]
        %v592 = vld [vmem:[#allocation5 + $0x650] sm:$0xff]
        %v593 = vld [vmem:[#allocation5 + $0x658] sm:$0xff]
        %v594 = vld [vmem:[#allocation5 + $0x660] sm:$0xff]
        %v595 = vld [vmem:[#allocation5 + $0x668] sm:$0xff]
        %v596 = vld [vmem:[#allocation5 + $0x670] sm:$0xff]
        %v597 = vld [vmem:[#allocation5 + $0x678] sm:$0xff]
        %v598 = vld [vmem:[#allocation5 + $0x680] sm:$0xff]
        %v599 = vld [vmem:[#allocation5 + $0x688] sm:$0xff]
        %v600 = vld [vmem:[#allocation5 + $0x690] sm:$0xff]
        %v601 = vld [vmem:[#allocation5 + $0x698] sm:$0xff]
        %v602 = vld [vmem:[#allocation5 + $0x6a0] sm:$0xff]
        %v603 = vld [vmem:[#allocation5 + $0x6a8] sm:$0xff]
        %v604 = vld [vmem:[#allocation5 + $0x6b0] sm:$0xff]
        %v605 = vld [vmem:[#allocation5 + $0x6b8] sm:$0xff]
        %v606 = vld [vmem:[#allocation5 + $0x6c0] sm:$0xff]
        %v607 = vld [vmem:[#allocation5 + $0x6c8] sm:$0xff]
        %v608 = vld [vmem:[#allocation5 + $0x6d0] sm:$0xff]
        %v609 = vld [vmem:[#allocation5 + $0x6d8] sm:$0xff]
        %v610 = vld [vmem:[#allocation5 + $0x6e0] sm:$0xff]
        %v611 = vld [vmem:[#allocation5 + $0x6e8] sm:$0xff]
        %v612 = vld [vmem:[#allocation5 + $0x6f0] sm:$0xff]
        %v613 = vld [vmem:[#allocation5 + $0x6f8] sm:$0xff]
        %v614 = vld [vmem:[#allocation5 + $0x700] sm:$0xff]
        %v615 = vld [vmem:[#allocation5 + $0x708] sm:$0xff]
        %v616 = vld [vmem:[#allocation5 + $0x710] sm:$0xff]
        %v617 = vld [vmem:[#allocation5 + $0x718] sm:$0xff]
        %v618 = vld [vmem:[#allocation5 + $0x720] sm:$0xff]
        %v619 = vld [vmem:[#allocation5 + $0x728] sm:$0xff]
        %v620 = vld [vmem:[#allocation5 + $0x730] sm:$0xff]
        %v621 = vld [vmem:[#allocation5 + $0x738] sm:$0xff]
        %v622 = vld [vmem:[#allocation5 + $0x740] sm:$0xff]
        %v623 = vld [vmem:[#allocation5 + $0x748] sm:$0xff]
        %v624 = vld [vmem:[#allocation5 + $0x750] sm:$0xff]
        %v625 = vld [vmem:[#allocation5 + $0x758] sm:$0xff]
        %v626 = vld [vmem:[#allocation5 + $0x760] sm:$0xff]
        %v627 = vld [vmem:[#allocation5 + $0x768] sm:$0xff]
        %v628 = vld [vmem:[#allocation5 + $0x770] sm:$0xff]
        %v629 = vld [vmem:[#allocation5 + $0x778] sm:$0xff]
        %v630 = vld [vmem:[#allocation5 + $0x780] sm:$0xff]
        %v631 = vld [vmem:[#allocation5 + $0x788] sm:$0xff]
        %v632 = vld [vmem:[#allocation5 + $0x790] sm:$0xff]
        %v633 = vld [vmem:[#allocation5 + $0x798] sm:$0xff]
        %v634 = vld [vmem:[#allocation5 + $0x7a0] sm:$0xff]
        %v635 = vld [vmem:[#allocation5 + $0x7a8] sm:$0xff]
        %v636 = vld [vmem:[#allocation5 + $0x7b0] sm:$0xff]
        %v637 = vld [vmem:[#allocation5 + $0x7b8] sm:$0xff]
        %v638 = vld [vmem:[#allocation5 + $0x7c0] sm:$0xff]
        %v639 = vld [vmem:[#allocation5 + $0x7c8] sm:$0xff]
        %v640 = vld [vmem:[#allocation5 + $0x7d0] sm:$0xff]
        %v641 = vld [vmem:[#allocation5 + $0x7d8] sm:$0xff]
        %v642 = vld [vmem:[#allocation5 + $0x7e0] sm:$0xff]
        %v643 = vld [vmem:[#allocation5 + $0x7e8] sm:$0xff]
        %v644 = vld [vmem:[#allocation5 + $0x7f0] sm:$0xff]
        %v645 = vld [vmem:[#allocation5 + $0x7f8] sm:$0xff]
        %v646 = vld [vmem:[#allocation5 + $0x800] sm:$0xff]
        %v647 = vld [vmem:[#allocation5 + $0x808] sm:$0xff]
        %v648 = vld [vmem:[#allocation5 + $0x810] sm:$0xff]
        %v649 = vld [vmem:[#allocation5 + $0x818] sm:$0xff]
        %v650 = vld [vmem:[#allocation5 + $0x820] sm:$0xff]
        %v651 = vld [vmem:[#allocation5 + $0x828] sm:$0xff]
        %v652 = vld [vmem:[#allocation5 + $0x830] sm:$0xff]
        %v653 = vld [vmem:[#allocation5 + $0x838] sm:$0xff]
        %v654 = vld [vmem:[#allocation5 + $0x840] sm:$0xff]
        %v655 = vld [vmem:[#allocation5 + $0x848] sm:$0xff]
        %v656 = vld [vmem:[#allocation5 + $0x850] sm:$0xff]
        %v657 = vld [vmem:[#allocation5 + $0x858] sm:$0xff]
        %v658 = vld [vmem:[#allocation5 + $0x860] sm:$0xff]
        %v659 = vld [vmem:[#allocation5 + $0x868] sm:$0xff]
        %v660 = vld [vmem:[#allocation5 + $0x870] sm:$0xff]
        %v661 = vld [vmem:[#allocation5 + $0x878] sm:$0xff]
        %v662 = vld [vmem:[#allocation5 + $0x880] sm:$0xff]
        %v663 = vld [vmem:[#allocation5 + $0x888] sm:$0xff]
        %v664 = vld [vmem:[#allocation5 + $0x890] sm:$0xff]
        %v665 = vld [vmem:[#allocation5 + $0x898] sm:$0xff]
        %v666 = vld [vmem:[#allocation5 + $0x8a0] sm:$0xff]
        %v667 = vld [vmem:[#allocation5 + $0x8a8] sm:$0xff]
        %v668 = vld [vmem:[#allocation5 + $0x8b0] sm:$0xff]
        %v669 = vld [vmem:[#allocation5 + $0x8b8] sm:$0xff]
        %v670 = vld [vmem:[#allocation5 + $0x8c0] sm:$0xff]
        %v671 = vld [vmem:[#allocation5 + $0x8c8] sm:$0xff]
        %v672 = vld [vmem:[#allocation5 + $0x8d0] sm:$0xff]
        %v673 = vld [vmem:[#allocation5 + $0x8d8] sm:$0xff]
        %v674 = vld [vmem:[#allocation5 + $0x8e0] sm:$0xff]
        %v675 = vld [vmem:[#allocation5 + $0x8e8] sm:$0xff]
        %v676 = vld [vmem:[#allocation5 + $0x8f0] sm:$0xff]
        %v677 = vld [vmem:[#allocation5 + $0x8f8] sm:$0xff]
        %v678 = vld [vmem:[#allocation5 + $0x900] sm:$0xff]
        %v679 = vld [vmem:[#allocation5 + $0x908] sm:$0xff]
        %v680 = vld [vmem:[#allocation5 + $0x910] sm:$0xff]
        %v681 = vld [vmem:[#allocation5 + $0x918] sm:$0xff]
        %v682 = vld [vmem:[#allocation5 + $0x920] sm:$0xff]
        %v683 = vld [vmem:[#allocation5 + $0x928] sm:$0xff]
        %v684 = vld [vmem:[#allocation5 + $0x930] sm:$0xff]
        %v685 = vld [vmem:[#allocation5 + $0x938] sm:$0xff]
        %v686 = vld [vmem:[#allocation5 + $0x940] sm:$0xff]
        %v687 = vld [vmem:[#allocation5 + $0x948] sm:$0xff]
        %v688 = vld [vmem:[#allocation5 + $0x950] sm:$0xff]
        %v689 = vld [vmem:[#allocation5 + $0x958] sm:$0xff]
        %v690 = vld [vmem:[#allocation5 + $0x960] sm:$0xff]
        %v691 = vld [vmem:[#allocation5 + $0x968] sm:$0xff]
        %v692 = vld [vmem:[#allocation5 + $0x970] sm:$0xff]
        %v693 = vld [vmem:[#allocation5 + $0x978] sm:$0xff]
        %v694 = vld [vmem:[#allocation5 + $0x980] sm:$0xff]
        %v695 = vld [vmem:[#allocation5 + $0x988] sm:$0xff]
        %v696 = vld [vmem:[#allocation5 + $0x990] sm:$0xff]
        %v697 = vld [vmem:[#allocation5 + $0x998] sm:$0xff]
        %v698 = vld [vmem:[#allocation5 + $0x9a0] sm:$0xff]
        %v699 = vld [vmem:[#allocation5 + $0x9a8] sm:$0xff]
        %v700 = vld [vmem:[#allocation5 + $0x9b0] sm:$0xff]
        %v701 = vld [vmem:[#allocation5 + $0x9b8] sm:$0xff]
        %v702 = vld [vmem:[#allocation5 + $0x9c0] sm:$0xff]
        %v703 = vld [vmem:[#allocation5 + $0x9c8] sm:$0xff]
        %v704 = vld [vmem:[#allocation5 + $0x9d0] sm:$0xff]
        %v705 = vld [vmem:[#allocation5 + $0x9d8] sm:$0xff]
        %v706 = vld [vmem:[#allocation5 + $0x9e0] sm:$0xff]
        %v707 = vld [vmem:[#allocation5 + $0x9e8] sm:$0xff]
        %v708 = vld [vmem:[#allocation5 + $0x9f0] sm:$0xff]
        %v709 = vld [vmem:[#allocation5 + $0x9f8] sm:$0xff]
        %v710 = vld [vmem:[#allocation5 + $0xa00] sm:$0xff]
        %v711 = vld [vmem:[#allocation5 + $0xa08] sm:$0xff]
        %v712 = vld [vmem:[#allocation5 + $0xa10] sm:$0xff]
        %v713 = vld [vmem:[#allocation5 + $0xa18] sm:$0xff]
        %v714 = vld [vmem:[#allocation5 + $0xa20] sm:$0xff]
        %v715 = vld [vmem:[#allocation5 + $0xa28] sm:$0xff]
        %v716 = vld [vmem:[#allocation5 + $0xa30] sm:$0xff]
        %v717 = vld [vmem:[#allocation5 + $0xa38] sm:$0xff]
        %v718 = vld [vmem:[#allocation5 + $0xa40] sm:$0xff]
        %v719 = vld [vmem:[#allocation5 + $0xa48] sm:$0xff]
        %v720 = vld [vmem:[#allocation5 + $0xa50] sm:$0xff]
        %v721 = vld [vmem:[#allocation5 + $0xa58] sm:$0xff]
        %v722 = vld [vmem:[#allocation5 + $0xa60] sm:$0xff]
        %v723 = vld [vmem:[#allocation5 + $0xa68] sm:$0xff]
        %v724 = vld [vmem:[#allocation5 + $0xa70] sm:$0xff]
        %v725 = vld [vmem:[#allocation5 + $0xa78] sm:$0xff]
        %v726 = vld [vmem:[#allocation5 + $0xa80] sm:$0xff]
        %v727 = vld [vmem:[#allocation5 + $0xa88] sm:$0xff]
        %v728 = vld [vmem:[#allocation5 + $0xa90] sm:$0xff]
        %v729 = vld [vmem:[#allocation5 + $0xa98] sm:$0xff]
        %v730 = vld [vmem:[#allocation5 + $0xaa0] sm:$0xff]
        %v731 = vld [vmem:[#allocation5 + $0xaa8] sm:$0xff]
        %v732 = vld [vmem:[#allocation5 + $0xab0] sm:$0xff]
        %v733 = vld [vmem:[#allocation5 + $0xab8] sm:$0xff]
        %v734 = vld [vmem:[#allocation5 + $0xac0] sm:$0xff]
        %v735 = vld [vmem:[#allocation5 + $0xac8] sm:$0xff]
        %v736 = vld [vmem:[#allocation5 + $0xad0] sm:$0xff]
        %v737 = vld [vmem:[#allocation5 + $0xad8] sm:$0xff]
        %v738 = vld [vmem:[#allocation5 + $0xae0] sm:$0xff]
        %v739 = vld [vmem:[#allocation5 + $0xae8] sm:$0xff]
        %v740 = vld [vmem:[#allocation5 + $0xaf0] sm:$0xff]
        %v741 = vld [vmem:[#allocation5 + $0xaf8] sm:$0xff]
        %v742 = vld [vmem:[#allocation5 + $0xb00] sm:$0xff]
        %v743 = vld [vmem:[#allocation5 + $0xb08] sm:$0xff]
        %v744 = vld [vmem:[#allocation5 + $0xb10] sm:$0xff]
        %v745 = vld [vmem:[#allocation5 + $0xb18] sm:$0xff]
        %v746 = vld [vmem:[#allocation5 + $0xb20] sm:$0xff]
        %v747 = vld [vmem:[#allocation5 + $0xb28] sm:$0xff]
        %v748 = vld [vmem:[#allocation5 + $0xb30] sm:$0xff]
        %v749 = vld [vmem:[#allocation5 + $0xb38] sm:$0xff]
        %v750 = vld [vmem:[#allocation5 + $0xb40] sm:$0xff]
        %v751 = vld [vmem:[#allocation5 + $0xb48] sm:$0xff]
        %v752 = vld [vmem:[#allocation5 + $0xb50] sm:$0xff]
        %v753 = vld [vmem:[#allocation5 + $0xb58] sm:$0xff]
        %v754 = vld [vmem:[#allocation5 + $0xb60] sm:$0xff]
        %v755 = vld [vmem:[#allocation5 + $0xb68] sm:$0xff]
        %v756 = vld [vmem:[#allocation5 + $0xb70] sm:$0xff]
        %v757 = vld [vmem:[#allocation5 + $0xb78] sm:$0xff]
        %v758 = vld [vmem:[#allocation5 + $0xb80] sm:$0xff]
        %v759 = vld [vmem:[#allocation5 + $0xb88] sm:$0xff]
        %v760 = vld [vmem:[#allocation5 + $0xb90] sm:$0xff]
        %v761 = vld [vmem:[#allocation5 + $0xb98] sm:$0xff]
        %v762 = vld [vmem:[#allocation5 + $0xba0] sm:$0xff]
        %v763 = vld [vmem:[#allocation5 + $0xba8] sm:$0xff]
        %v764 = vld [vmem:[#allocation5 + $0xbb0] sm:$0xff]
        %v765 = vld [vmem:[#allocation5 + $0xbb8] sm:$0xff]
        %v766 = vld [vmem:[#allocation5 + $0xbc0] sm:$0xff]
        %v767 = vld [vmem:[#allocation5 + $0xbc8] sm:$0xff]
        %v768 = vld [vmem:[#allocation5 + $0xbd0] sm:$0xff]
        %v769 = vld [vmem:[#allocation5 + $0xbd8] sm:$0xff]
        %v770 = vld [vmem:[#allocation5 + $0xbe0] sm:$0xff]
        %v771 = vld [vmem:[#allocation5 + $0xbe8] sm:$0xff]
        %v772 = vld [vmem:[#allocation5 + $0xbf0] sm:$0xff]
        %v773 = vld [vmem:[#allocation5 + $0xbf8] sm:$0xff]
        %v774 = vld [vmem:[#allocation5 + $0xc00] sm:$0xff]
        %v775 = vld [vmem:[#allocation5 + $0xc08] sm:$0xff]
        %v776 = vld [vmem:[#allocation5 + $0xc10] sm:$0xff]
        %v777 = vld [vmem:[#allocation5 + $0xc18] sm:$0xff]
        %v778 = vld [vmem:[#allocation5 + $0xc20] sm:$0xff]
        %v779 = vld [vmem:[#allocation5 + $0xc28] sm:$0xff]
        %v780 = vld [vmem:[#allocation5 + $0xc30] sm:$0xff]
        %v781 = vld [vmem:[#allocation5 + $0xc38] sm:$0xff]
        %v782 = vld [vmem:[#allocation5 + $0xc40] sm:$0xff]
        %v783 = vld [vmem:[#allocation5 + $0xc48] sm:$0xff]
        %v784 = vld [vmem:[#allocation5 + $0xc50] sm:$0xff]
        %v785 = vld [vmem:[#allocation5 + $0xc58] sm:$0xff]
        %v786 = vld [vmem:[#allocation5 + $0xc60] sm:$0xff]
        %v787 = vld [vmem:[#allocation5 + $0xc68] sm:$0xff]
        %v788 = vld [vmem:[#allocation5 + $0xc70] sm:$0xff]
        %v789 = vld [vmem:[#allocation5 + $0xc78] sm:$0xff]
        %v790 = vld [vmem:[#allocation5 + $0xc80] sm:$0xff]
        %v791 = vld [vmem:[#allocation5 + $0xc88] sm:$0xff]
        %v792 = vld [vmem:[#allocation5 + $0xc90] sm:$0xff]
        %v793 = vld [vmem:[#allocation5 + $0xc98] sm:$0xff]
        %v794 = vld [vmem:[#allocation5 + $0xca0] sm:$0xff]
        %v795 = vld [vmem:[#allocation5 + $0xca8] sm:$0xff]
        %v796 = vld [vmem:[#allocation5 + $0xcb0] sm:$0xff]
        %v797 = vld [vmem:[#allocation5 + $0xcb8] sm:$0xff]
        %v798 = vld [vmem:[#allocation5 + $0xcc0] sm:$0xff]
        %v799 = vld [vmem:[#allocation5 + $0xcc8] sm:$0xff]
        %v800 = vld [vmem:[#allocation5 + $0xcd0] sm:$0xff]
        %v801 = vld [vmem:[#allocation5 + $0xcd8] sm:$0xff]
        %v802 = vld [vmem:[#allocation5 + $0xce0] sm:$0xff]
        %v803 = vld [vmem:[#allocation5 + $0xce8] sm:$0xff]
        %v804 = vld [vmem:[#allocation5 + $0xcf0] sm:$0xff]
        %v805 = vld [vmem:[#allocation5 + $0xcf8] sm:$0xff]
        %v806 = vld [vmem:[#allocation5 + $0xd00] sm:$0xff]
        %v807 = vld [vmem:[#allocation5 + $0xd08] sm:$0xff]
        %v808 = vld [vmem:[#allocation5 + $0xd10] sm:$0xff]
        %v809 = vld [vmem:[#allocation5 + $0xd18] sm:$0xff]
        %v810 = vld [vmem:[#allocation5 + $0xd20] sm:$0xff]
        %v811 = vld [vmem:[#allocation5 + $0xd28] sm:$0xff]
        %v812 = vld [vmem:[#allocation5 + $0xd30] sm:$0xff]
        %v813 = vld [vmem:[#allocation5 + $0xd38] sm:$0xff]
        %v814 = vld [vmem:[#allocation5 + $0xd40] sm:$0xff]
        %v815 = vld [vmem:[#allocation5 + $0xd48] sm:$0xff]
        %v816 = vld [vmem:[#allocation5 + $0xd50] sm:$0xff]
        %v817 = vld [vmem:[#allocation5 + $0xd58] sm:$0xff]
        %v818 = vld [vmem:[#allocation5 + $0xd60] sm:$0xff]
        %v819 = vld [vmem:[#allocation5 + $0xd68] sm:$0xff]
        %v820 = vld [vmem:[#allocation5 + $0xd70] sm:$0xff]
        %v821 = vld [vmem:[#allocation5 + $0xd78] sm:$0xff]
        %v822 = vld [vmem:[#allocation5 + $0xd80] sm:$0xff]
        %v823 = vld [vmem:[#allocation5 + $0xd88] sm:$0xff]
        %v824 = vld [vmem:[#allocation5 + $0xd90] sm:$0xff]
        %v825 = vld [vmem:[#allocation5 + $0xd98] sm:$0xff]
        %v826 = vld [vmem:[#allocation5 + $0xda0] sm:$0xff]
        %v827 = vld [vmem:[#allocation5 + $0xda8] sm:$0xff]
        %v828 = vld [vmem:[#allocation5 + $0xdb0] sm:$0xff]
        %v829 = vld [vmem:[#allocation5 + $0xdb8] sm:$0xff]
        %v830 = vld [vmem:[#allocation5 + $0xdc0] sm:$0xff]
        %v831 = vld [vmem:[#allocation5 + $0xdc8] sm:$0xff]
        %v832 = vld [vmem:[#allocation5 + $0xdd0] sm:$0xff]
        %v833 = vld [vmem:[#allocation5 + $0xdd8] sm:$0xff]
        %v834 = vld [vmem:[#allocation5 + $0xde0] sm:$0xff]
        %v835 = vld [vmem:[#allocation5 + $0xde8] sm:$0xff]
        %v836 = vld [vmem:[#allocation5 + $0xdf0] sm:$0xff]
        %v837 = vld [vmem:[#allocation5 + $0xdf8] sm:$0xff]
        %v838 = vld [vmem:[#allocation5 + $0xe00] sm:$0xff]
        %v839 = vld [vmem:[#allocation5 + $0xe08] sm:$0xff]
        %v840 = vld [vmem:[#allocation5 + $0xe10] sm:$0xff]
        %v841 = vld [vmem:[#allocation5 + $0xe18] sm:$0xff]
        %v842 = vld [vmem:[#allocation5 + $0xe20] sm:$0xff]
        %v843 = vld [vmem:[#allocation5 + $0xe28] sm:$0xff]
        %v844 = vld [vmem:[#allocation5 + $0xe30] sm:$0xff]
        %v845 = vld [vmem:[#allocation5 + $0xe38] sm:$0xff]
        %v846 = vld [vmem:[#allocation5 + $0xe40] sm:$0xff]
        %v847 = vld [vmem:[#allocation5 + $0xe48] sm:$0xff]
        %v848 = vld [vmem:[#allocation5 + $0xe50] sm:$0xf]
        %v849 = vld [vmem:[#allocation5 + $0xe58] sm:$0xf]
        %v850 = vld [vmem:[#allocation7] sm:$0x3]
        %v852 = vlaneseq
        %v853 = vshrl.u32 %v852, 7
        %v854 = vsub.s32 0, %v853
        %v855 = vrot.slane %v850, %v854
        %v856 = vlaneseq
        %v857 = vshrl.u32 %v856, 7
        %v858 = vsub.s32 1, %v857
        %v859 = vrot.slane %v850, %v858
        %vm862 = vcmask 359424
        %v864 = vsel %vm862, %v389, 0
        %vm866 = vcmask 1043456
        %v868 = vsel %vm866, %v848, 0
        %v871 = vsel %vm866, %v849, 0
        %873 = vmatprep.subr.mxu0 %v421
        %874 = vmatpush1.msra.mxu0 %v420
        %875 = vmatprep.subr.mxu0 %v419
        %876 = vmatpush1.msra.mxu0 %v418
        %877 = vmatprep.subr.mxu0 %v417
        %878 = vmatpush1.msra.mxu0 %v416
        %879 = vmatprep.subr.mxu0 %v415
        %880 = vmatpush1.msra.mxu0 %v414
        %881 = vmatprep.subr.mxu0 %v413
        %882 = vmatpush1.msra.mxu0 %v412
        %883 = vmatprep.subr.mxu0 %v411
        %884 = vmatpush1.msra.mxu0 %v410
        %885 = vmatprep.subr.mxu0 %v409
        %886 = vmatpush1.msra.mxu0 %v408
        %887 = vmatprep.subr.mxu0 %v407
        %888 = vmatpush1.msra.mxu0 %v406
        %889 = vmatprep.subr.mxu0 %v405
        %890 = vmatpush1.msra.mxu0 %v404
        %891 = vmatprep.subr.mxu0 %v403
        %892 = vmatpush1.msra.mxu0 %v402
        %893 = vmatprep.subr.mxu0 %v401
        %894 = vmatpush1.msra.mxu0 %v400
        %895 = vmatprep.subr.mxu0 %v399
        %896 = vmatpush1.msra.mxu0 %v398
        %897 = vmatprep.subr.mxu0 %v397
        %898 = vmatpush1.msra.mxu0 %v396
        %899 = vmatprep.subr.mxu0 %v395
        %900 = vmatpush1.msra.mxu0 %v394
        %901 = vmatprep.subr.mxu0 %v393
        %902 = vmatpush1.msra.mxu0 %v392
        %903 = vmatprep.subr.mxu0 %v391
        %904 = vmatpush1.msra.mxu0 %v390
        %905 = vmatprep.subr.mxu0 %v453
        %906 = vmatpush2.msra.mxu0 %v452
        %907 = vmatprep.subr.mxu0 %v451
        %908 = vmatpush2.msra.mxu0 %v450
        %909 = vmatprep.subr.mxu0 %v449
        %910 = vmatpush2.msra.mxu0 %v448
        %911 = vmatprep.subr.mxu0 %v447
        %912 = vmatpush2.msra.mxu0 %v446
        %913 = vmatprep.subr.mxu0 %v445
        %914 = vmatpush2.msra.mxu0 %v444
        %915 = vmatprep.subr.mxu0 %v443
        %916 = vmatpush2.msra.mxu0 %v442
        %917 = vmatprep.subr.mxu0 %v441
        %918 = vmatpush2.msra.mxu0 %v440
        %919 = vmatprep.subr.mxu0 %v439
        %920 = vmatpush2.msra.mxu0 %v438
        %921 = vmatprep.subr.mxu0 %v437
        %922 = vmatpush2.msra.mxu0 %v436
        %923 = vmatprep.subr.mxu0 %v435
        %924 = vmatpush2.msra.mxu0 %v434
        %925 = vmatprep.subr.mxu0 %v433
        %926 = vmatpush2.msra.mxu0 %v432
        %927 = vmatprep.subr.mxu0 %v431
        %928 = vmatpush2.msra.mxu0 %v430
        %929 = vmatprep.subr.mxu0 %v429
        %930 = vmatpush2.msra.mxu0 %v428
        %931 = vmatprep.subr.mxu0 %v427
        %932 = vmatpush2.msra.mxu0 %v426
        %933 = vmatprep.subr.mxu0 %v425
        %934 = vmatpush2.msra.mxu0 %v424
        %935 = vmatprep.subr.mxu0 %v423
        %936 = vmatpush2.msra.mxu0 %v422
        %937 = vmatprep.mubr.f32.mxu0 %v376
        %938 = vmatmul.mubr.f32.gmra.mxu0 %v375
        %v939 = vpop.f32.mrf.mxu0
        %v940 = vadd.f32 %v855, %v939
        %v941 = vpop.f32.mrf.mxu0
        %v942 = vadd.f32 %v859, %v941
        %943 = vdwg.mxu0
        %944 = vmatprep.subr.mxu0 %v485
        %945 = vmatpush1.msra.mxu0 %v484
        %946 = vmatprep.subr.mxu0 %v483
        %947 = vmatpush1.msra.mxu0 %v482
        %948 = vmatprep.subr.mxu0 %v481
        %949 = vmatpush1.msra.mxu0 %v480
        %950 = vmatprep.subr.mxu0 %v479
        %951 = vmatpush1.msra.mxu0 %v478
        %952 = vmatprep.subr.mxu0 %v477
        %953 = vmatpush1.msra.mxu0 %v476
        %954 = vmatprep.subr.mxu0 %v475
        %955 = vmatpush1.msra.mxu0 %v474
        %956 = vmatprep.subr.mxu0 %v473
        %957 = vmatpush1.msra.mxu0 %v472
        %958 = vmatprep.subr.mxu0 %v471
        %959 = vmatpush1.msra.mxu0 %v470
        %960 = vmatprep.subr.mxu0 %v469
        %961 = vmatpush1.msra.mxu0 %v468
        %962 = vmatprep.subr.mxu0 %v467
        %963 = vmatpush1.msra.mxu0 %v466
        %964 = vmatprep.subr.mxu0 %v465
        %965 = vmatpush1.msra.mxu0 %v464
        %966 = vmatprep.subr.mxu0 %v463
        %967 = vmatpush1.msra.mxu0 %v462
        %968 = vmatprep.subr.mxu0 %v461
        %969 = vmatpush1.msra.mxu0 %v460
        %970 = vmatprep.subr.mxu0 %v459
        %971 = vmatpush1.msra.mxu0 %v458
        %972 = vmatprep.subr.mxu0 %v457
        %973 = vmatpush1.msra.mxu0 %v456
        %974 = vmatprep.subr.mxu0 %v455
        %975 = vmatpush1.msra.mxu0 %v454
        %976 = vmatprep.subr.mxu0 %v517
        %977 = vmatpush2.msra.mxu0 %v516
        %978 = vmatprep.subr.mxu0 %v515
        %979 = vmatpush2.msra.mxu0 %v514
        %980 = vmatprep.subr.mxu0 %v513
        %981 = vmatpush2.msra.mxu0 %v512
        %982 = vmatprep.subr.mxu0 %v511
        %983 = vmatpush2.msra.mxu0 %v510
        %984 = vmatprep.subr.mxu0 %v509
        %985 = vmatpush2.msra.mxu0 %v508
        %986 = vmatprep.subr.mxu0 %v507
        %987 = vmatpush2.msra.mxu0 %v506
        %988 = vmatprep.subr.mxu0 %v505
        %989 = vmatpush2.msra.mxu0 %v504
        %990 = vmatprep.subr.mxu0 %v503
        %991 = vmatpush2.msra.mxu0 %v502
        %992 = vmatprep.subr.mxu0 %v501
        %993 = vmatpush2.msra.mxu0 %v500
        %994 = vmatprep.subr.mxu0 %v499
        %995 = vmatpush2.msra.mxu0 %v498
        %996 = vmatprep.subr.mxu0 %v497
        %997 = vmatpush2.msra.mxu0 %v496
        %998 = vmatprep.subr.mxu0 %v495
        %999 = vmatpush2.msra.mxu0 %v494
        %1000 = vmatprep.subr.mxu0 %v493
        %1001 = vmatpush2.msra.mxu0 %v492
        %1002 = vmatprep.subr.mxu0 %v491
        %1003 = vmatpush2.msra.mxu0 %v490
        %1004 = vmatprep.subr.mxu0 %v489
        %1005 = vmatpush2.msra.mxu0 %v488
        %1006 = vmatprep.subr.mxu0 %v487
        %1007 = vmatpush2.msra.mxu0 %v486
        %1008 = vmatprep.mubr.f32.mxu0 %v378
        %1009 = vmatmul.mubr.f32.gmra.mxu0 %v377
        %v1010 = vpop.f32.mrf.mxu0
        %v1011 = vadd.f32 %v940, %v1010
        %v1012 = vpop.f32.mrf.mxu0
        %v1013 = vadd.f32 %v942, %v1012
        %1014 = vdwg.mxu0
        %1015 = vmatprep.subr.mxu0 %v549
        %1016 = vmatpush1.msra.mxu0 %v548
        %1017 = vmatprep.subr.mxu0 %v547
        %1018 = vmatpush1.msra.mxu0 %v546
        %1019 = vmatprep.subr.mxu0 %v545
        %1020 = vmatpush1.msra.mxu0 %v544
        %1021 = vmatprep.subr.mxu0 %v543
        %1022 = vmatpush1.msra.mxu0 %v542
        %1023 = vmatprep.subr.mxu0 %v541
        %1024 = vmatpush1.msra.mxu0 %v540
        %1025 = vmatprep.subr.mxu0 %v539
        %1026 = vmatpush1.msra.mxu0 %v538
        %1027 = vmatprep.subr.mxu0 %v537
        %1028 = vmatpush1.msra.mxu0 %v536
        %1029 = vmatprep.subr.mxu0 %v535
        %1030 = vmatpush1.msra.mxu0 %v534
        %1031 = vmatprep.subr.mxu0 %v533
        %1032 = vmatpush1.msra.mxu0 %v532
        %1033 = vmatprep.subr.mxu0 %v531
        %1034 = vmatpush1.msra.mxu0 %v530
        %1035 = vmatprep.subr.mxu0 %v529
        %1036 = vmatpush1.msra.mxu0 %v528
        %1037 = vmatprep.subr.mxu0 %v527
        %1038 = vmatpush1.msra.mxu0 %v526
        %1039 = vmatprep.subr.mxu0 %v525
        %1040 = vmatpush1.msra.mxu0 %v524
        %1041 = vmatprep.subr.mxu0 %v523
        %1042 = vmatpush1.msra.mxu0 %v522
        %1043 = vmatprep.subr.mxu0 %v521
        %1044 = vmatpush1.msra.mxu0 %v520
        %1045 = vmatprep.subr.mxu0 %v519
        %1046 = vmatpush1.msra.mxu0 %v518
        %1047 = vmatprep.subr.mxu0 %v581
        %1048 = vmatpush2.msra.mxu0 %v580
        %1049 = vmatprep.subr.mxu0 %v579
        %1050 = vmatpush2.msra.mxu0 %v578
        %1051 = vmatprep.subr.mxu0 %v577
        %1052 = vmatpush2.msra.mxu0 %v576
        %1053 = vmatprep.subr.mxu0 %v575
        %1054 = vmatpush2.msra.mxu0 %v574
        %1055 = vmatprep.subr.mxu0 %v573
        %1056 = vmatpush2.msra.mxu0 %v572
        %1057 = vmatprep.subr.mxu0 %v571
        %1058 = vmatpush2.msra.mxu0 %v570
        %1059 = vmatprep.subr.mxu0 %v569
        %1060 = vmatpush2.msra.mxu0 %v568
        %1061 = vmatprep.subr.mxu0 %v567
        %1062 = vmatpush2.msra.mxu0 %v566
        %1063 = vmatprep.subr.mxu0 %v565
        %1064 = vmatpush2.msra.mxu0 %v564
        %1065 = vmatprep.subr.mxu0 %v563
        %1066 = vmatpush2.msra.mxu0 %v562
        %1067 = vmatprep.subr.mxu0 %v561
        %1068 = vmatpush2.msra.mxu0 %v560
        %1069 = vmatprep.subr.mxu0 %v559
        %1070 = vmatpush2.msra.mxu0 %v558
        %1071 = vmatprep.subr.mxu0 %v557
        %1072 = vmatpush2.msra.mxu0 %v556
        %1073 = vmatprep.subr.mxu0 %v555
        %1074 = vmatpush2.msra.mxu0 %v554
        %1075 = vmatprep.subr.mxu0 %v553
        %1076 = vmatpush2.msra.mxu0 %v552
        %1077 = vmatprep.subr.mxu0 %v551
        %1078 = vmatpush2.msra.mxu0 %v550
        %1079 = vmatprep.mubr.f32.mxu0 %v380
        %1080 = vmatmul.mubr.f32.gmra.mxu0 %v379
        %v1081 = vpop.f32.mrf.mxu0
        %v1082 = vadd.f32 %v1011, %v1081
        %v1083 = vpop.f32.mrf.mxu0
        %v1084 = vadd.f32 %v1013, %v1083
        %1085 = vdwg.mxu0
        %1086 = vmatprep.subr.mxu0 %v613
        %1087 = vmatpush1.msra.mxu0 %v612
        %1088 = vmatprep.subr.mxu0 %v611
        %1089 = vmatpush1.msra.mxu0 %v610
        %1090 = vmatprep.subr.mxu0 %v609
        %1091 = vmatpush1.msra.mxu0 %v608
        %1092 = vmatprep.subr.mxu0 %v607
        %1093 = vmatpush1.msra.mxu0 %v606
        %1094 = vmatprep.subr.mxu0 %v605
        %1095 = vmatpush1.msra.mxu0 %v604
        %1096 = vmatprep.subr.mxu0 %v603
        %1097 = vmatpush1.msra.mxu0 %v602
        %1098 = vmatprep.subr.mxu0 %v601
        %1099 = vmatpush1.msra.mxu0 %v600
        %1100 = vmatprep.subr.mxu0 %v599
        %1101 = vmatpush1.msra.mxu0 %v598
        %1102 = vmatprep.subr.mxu0 %v597
        %1103 = vmatpush1.msra.mxu0 %v596
        %1104 = vmatprep.subr.mxu0 %v595
        %1105 = vmatpush1.msra.mxu0 %v594
        %1106 = vmatprep.subr.mxu0 %v593
        %1107 = vmatpush1.msra.mxu0 %v592
        %1108 = vmatprep.subr.mxu0 %v591
        %1109 = vmatpush1.msra.mxu0 %v590
        %1110 = vmatprep.subr.mxu0 %v589
        %1111 = vmatpush1.msra.mxu0 %v588
        %1112 = vmatprep.subr.mxu0 %v587
        %1113 = vmatpush1.msra.mxu0 %v586
        %1114 = vmatprep.subr.mxu0 %v585
        %1115 = vmatpush1.msra.mxu0 %v584
        %1116 = vmatprep.subr.mxu0 %v583
        %1117 = vmatpush1.msra.mxu0 %v582
        %1118 = vmatprep.subr.mxu0 %v645
        %1119 = vmatpush2.msra.mxu0 %v644
        %1120 = vmatprep.subr.mxu0 %v643
        %1121 = vmatpush2.msra.mxu0 %v642
        %1122 = vmatprep.subr.mxu0 %v641
        %1123 = vmatpush2.msra.mxu0 %v640
        %1124 = vmatprep.subr.mxu0 %v639
        %1125 = vmatpush2.msra.mxu0 %v638
        %1126 = vmatprep.subr.mxu0 %v637
        %1127 = vmatpush2.msra.mxu0 %v636
        %1128 = vmatprep.subr.mxu0 %v635
        %1129 = vmatpush2.msra.mxu0 %v634
        %1130 = vmatprep.subr.mxu0 %v633
        %1131 = vmatpush2.msra.mxu0 %v632
        %1132 = vmatprep.subr.mxu0 %v631
        %1133 = vmatpush2.msra.mxu0 %v630
        %1134 = vmatprep.subr.mxu0 %v629
        %1135 = vmatpush2.msra.mxu0 %v628
        %1136 = vmatprep.subr.mxu0 %v627
        %1137 = vmatpush2.msra.mxu0 %v626
        %1138 = vmatprep.subr.mxu0 %v625
        %1139 = vmatpush2.msra.mxu0 %v624
        %1140 = vmatprep.subr.mxu0 %v623
        %1141 = vmatpush2.msra.mxu0 %v622
        %1142 = vmatprep.subr.mxu0 %v621
        %1143 = vmatpush2.msra.mxu0 %v620
        %1144 = vmatprep.subr.mxu0 %v619
        %1145 = vmatpush2.msra.mxu0 %v618
        %1146 = vmatprep.subr.mxu0 %v617
        %1147 = vmatpush2.msra.mxu0 %v616
        %1148 = vmatprep.subr.mxu0 %v615
        %1149 = vmatpush2.msra.mxu0 %v614
        %1150 = vmatprep.mubr.f32.mxu0 %v382
        %1151 = vmatmul.mubr.f32.gmra.mxu0 %v381
        %v1152 = vpop.f32.mrf.mxu0
        %v1153 = vadd.f32 %v1082, %v1152
        %v1154 = vpop.f32.mrf.mxu0
        %v1155 = vadd.f32 %v1084, %v1154
        %1156 = vdwg.mxu0
        %1157 = vmatprep.subr.mxu0 %v677
        %1158 = vmatpush1.msra.mxu0 %v676
        %1159 = vmatprep.subr.mxu0 %v675
        %1160 = vmatpush1.msra.mxu0 %v674
        %1161 = vmatprep.subr.mxu0 %v673
        %1162 = vmatpush1.msra.mxu0 %v672
        %1163 = vmatprep.subr.mxu0 %v671
        %1164 = vmatpush1.msra.mxu0 %v670
        %1165 = vmatprep.subr.mxu0 %v669
        %1166 = vmatpush1.msra.mxu0 %v668
        %1167 = vmatprep.subr.mxu0 %v667
        %1168 = vmatpush1.msra.mxu0 %v666
        %1169 = vmatprep.subr.mxu0 %v665
        %1170 = vmatpush1.msra.mxu0 %v664
        %1171 = vmatprep.subr.mxu0 %v663
        %1172 = vmatpush1.msra.mxu0 %v662
        %1173 = vmatprep.subr.mxu0 %v661
        %1174 = vmatpush1.msra.mxu0 %v660
        %1175 = vmatprep.subr.mxu0 %v659
        %1176 = vmatpush1.msra.mxu0 %v658
        %1177 = vmatprep.subr.mxu0 %v657
        %1178 = vmatpush1.msra.mxu0 %v656
        %1179 = vmatprep.subr.mxu0 %v655
        %1180 = vmatpush1.msra.mxu0 %v654
        %1181 = vmatprep.subr.mxu0 %v653
        %1182 = vmatpush1.msra.mxu0 %v652
        %1183 = vmatprep.subr.mxu0 %v651
        %1184 = vmatpush1.msra.mxu0 %v650
        %1185 = vmatprep.subr.mxu0 %v649
        %1186 = vmatpush1.msra.mxu0 %v648
        %1187 = vmatprep.subr.mxu0 %v647
        %1188 = vmatpush1.msra.mxu0 %v646
        %1189 = vmatprep.subr.mxu0 %v709
        %1190 = vmatpush2.msra.mxu0 %v708
        %1191 = vmatprep.subr.mxu0 %v707
        %1192 = vmatpush2.msra.mxu0 %v706
        %1193 = vmatprep.subr.mxu0 %v705
        %1194 = vmatpush2.msra.mxu0 %v704
        %1195 = vmatprep.subr.mxu0 %v703
        %1196 = vmatpush2.msra.mxu0 %v702
        %1197 = vmatprep.subr.mxu0 %v701
        %1198 = vmatpush2.msra.mxu0 %v700
        %1199 = vmatprep.subr.mxu0 %v699
        %1200 = vmatpush2.msra.mxu0 %v698
        %1201 = vmatprep.subr.mxu0 %v697
        %1202 = vmatpush2.msra.mxu0 %v696
        %1203 = vmatprep.subr.mxu0 %v695
        %1204 = vmatpush2.msra.mxu0 %v694
        %1205 = vmatprep.subr.mxu0 %v693
        %1206 = vmatpush2.msra.mxu0 %v692
        %1207 = vmatprep.subr.mxu0 %v691
        %1208 = vmatpush2.msra.mxu0 %v690
        %1209 = vmatprep.subr.mxu0 %v689
        %1210 = vmatpush2.msra.mxu0 %v688
        %1211 = vmatprep.subr.mxu0 %v687
        %1212 = vmatpush2.msra.mxu0 %v686
        %1213 = vmatprep.subr.mxu0 %v685
        %1214 = vmatpush2.msra.mxu0 %v684
        %1215 = vmatprep.subr.mxu0 %v683
        %1216 = vmatpush2.msra.mxu0 %v682
        %1217 = vmatprep.subr.mxu0 %v681
        %1218 = vmatpush2.msra.mxu0 %v680
        %1219 = vmatprep.subr.mxu0 %v679
        %1220 = vmatpush2.msra.mxu0 %v678
        %1221 = vmatprep.mubr.f32.mxu0 %v384
        %1222 = vmatmul.mubr.f32.gmra.mxu0 %v383
        %v1223 = vpop.f32.mrf.mxu0
        %v1224 = vadd.f32 %v1153, %v1223
        %v1225 = vpop.f32.mrf.mxu0
        %v1226 = vadd.f32 %v1155, %v1225
        %1227 = vdwg.mxu0
        %1228 = vmatprep.subr.mxu0 %v741
        %1229 = vmatpush1.msra.mxu0 %v740
        %1230 = vmatprep.subr.mxu0 %v739
        %1231 = vmatpush1.msra.mxu0 %v738
        %1232 = vmatprep.subr.mxu0 %v737
        %1233 = vmatpush1.msra.mxu0 %v736
        %1234 = vmatprep.subr.mxu0 %v735
        %1235 = vmatpush1.msra.mxu0 %v734
        %1236 = vmatprep.subr.mxu0 %v733
        %1237 = vmatpush1.msra.mxu0 %v732
        %1238 = vmatprep.subr.mxu0 %v731
        %1239 = vmatpush1.msra.mxu0 %v730
        %1240 = vmatprep.subr.mxu0 %v729
        %1241 = vmatpush1.msra.mxu0 %v728
        %1242 = vmatprep.subr.mxu0 %v727
        %1243 = vmatpush1.msra.mxu0 %v726
        %1244 = vmatprep.subr.mxu0 %v725
        %1245 = vmatpush1.msra.mxu0 %v724
        %1246 = vmatprep.subr.mxu0 %v723
        %1247 = vmatpush1.msra.mxu0 %v722
        %1248 = vmatprep.subr.mxu0 %v721
        %1249 = vmatpush1.msra.mxu0 %v720
        %1250 = vmatprep.subr.mxu0 %v719
        %1251 = vmatpush1.msra.mxu0 %v718
        %1252 = vmatprep.subr.mxu0 %v717
        %1253 = vmatpush1.msra.mxu0 %v716
        %1254 = vmatprep.subr.mxu0 %v715
        %1255 = vmatpush1.msra.mxu0 %v714
        %1256 = vmatprep.subr.mxu0 %v713
        %1257 = vmatpush1.msra.mxu0 %v712
        %1258 = vmatprep.subr.mxu0 %v711
        %1259 = vmatpush1.msra.mxu0 %v710
        %1260 = vmatprep.subr.mxu0 %v773
        %1261 = vmatpush2.msra.mxu0 %v772
        %1262 = vmatprep.subr.mxu0 %v771
        %1263 = vmatpush2.msra.mxu0 %v770
        %1264 = vmatprep.subr.mxu0 %v769
        %1265 = vmatpush2.msra.mxu0 %v768
        %1266 = vmatprep.subr.mxu0 %v767
        %1267 = vmatpush2.msra.mxu0 %v766
        %1268 = vmatprep.subr.mxu0 %v765
        %1269 = vmatpush2.msra.mxu0 %v764
        %1270 = vmatprep.subr.mxu0 %v763
        %1271 = vmatpush2.msra.mxu0 %v762
        %1272 = vmatprep.subr.mxu0 %v761
        %1273 = vmatpush2.msra.mxu0 %v760
        %1274 = vmatprep.subr.mxu0 %v759
        %1275 = vmatpush2.msra.mxu0 %v758
        %1276 = vmatprep.subr.mxu0 %v757
        %1277 = vmatpush2.msra.mxu0 %v756
        %1278 = vmatprep.subr.mxu0 %v755
        %1279 = vmatpush2.msra.mxu0 %v754
        %1280 = vmatprep.subr.mxu0 %v753
        %1281 = vmatpush2.msra.mxu0 %v752
        %1282 = vmatprep.subr.mxu0 %v751
        %1283 = vmatpush2.msra.mxu0 %v750
        %1284 = vmatprep.subr.mxu0 %v749
        %1285 = vmatpush2.msra.mxu0 %v748
        %1286 = vmatprep.subr.mxu0 %v747
        %1287 = vmatpush2.msra.mxu0 %v746
        %1288 = vmatprep.subr.mxu0 %v745
        %1289 = vmatpush2.msra.mxu0 %v744
        %1290 = vmatprep.subr.mxu0 %v743
        %1291 = vmatpush2.msra.mxu0 %v742
        %1292 = vmatprep.mubr.f32.mxu0 %v386
        %1293 = vmatmul.mubr.f32.gmra.mxu0 %v385
        %v1294 = vpop.f32.mrf.mxu0
        %v1295 = vadd.f32 %v1224, %v1294
        %v1296 = vpop.f32.mrf.mxu0
        %v1297 = vadd.f32 %v1226, %v1296
        %1298 = vdwg.mxu0
        %1299 = vmatprep.subr.mxu0 %v805
        %1300 = vmatpush1.msra.mxu0 %v804
        %1301 = vmatprep.subr.mxu0 %v803
        %1302 = vmatpush1.msra.mxu0 %v802
        %1303 = vmatprep.subr.mxu0 %v801
        %1304 = vmatpush1.msra.mxu0 %v800
        %1305 = vmatprep.subr.mxu0 %v799
        %1306 = vmatpush1.msra.mxu0 %v798
        %1307 = vmatprep.subr.mxu0 %v797
        %1308 = vmatpush1.msra.mxu0 %v796
        %1309 = vmatprep.subr.mxu0 %v795
        %1310 = vmatpush1.msra.mxu0 %v794
        %1311 = vmatprep.subr.mxu0 %v793
        %1312 = vmatpush1.msra.mxu0 %v792
        %1313 = vmatprep.subr.mxu0 %v791
        %1314 = vmatpush1.msra.mxu0 %v790
        %1315 = vmatprep.subr.mxu0 %v789
        %1316 = vmatpush1.msra.mxu0 %v788
        %1317 = vmatprep.subr.mxu0 %v787
        %1318 = vmatpush1.msra.mxu0 %v786
        %1319 = vmatprep.subr.mxu0 %v785
        %1320 = vmatpush1.msra.mxu0 %v784
        %1321 = vmatprep.subr.mxu0 %v783
        %1322 = vmatpush1.msra.mxu0 %v782
        %1323 = vmatprep.subr.mxu0 %v781
        %1324 = vmatpush1.msra.mxu0 %v780
        %1325 = vmatprep.subr.mxu0 %v779
        %1326 = vmatpush1.msra.mxu0 %v778
        %1327 = vmatprep.subr.mxu0 %v777
        %1328 = vmatpush1.msra.mxu0 %v776
        %1329 = vmatprep.subr.mxu0 %v775
        %1330 = vmatpush1.msra.mxu0 %v774
        %1331 = vmatprep.subr.mxu0 %v837
        %1332 = vmatpush2.msra.mxu0 %v836
        %1333 = vmatprep.subr.mxu0 %v835
        %1334 = vmatpush2.msra.mxu0 %v834
        %1335 = vmatprep.subr.mxu0 %v833
        %1336 = vmatpush2.msra.mxu0 %v832
        %1337 = vmatprep.subr.mxu0 %v831
        %1338 = vmatpush2.msra.mxu0 %v830
        %1339 = vmatprep.subr.mxu0 %v829
        %1340 = vmatpush2.msra.mxu0 %v828
        %1341 = vmatprep.subr.mxu0 %v827
        %1342 = vmatpush2.msra.mxu0 %v826
        %1343 = vmatprep.subr.mxu0 %v825
        %1344 = vmatpush2.msra.mxu0 %v824
        %1345 = vmatprep.subr.mxu0 %v823
        %1346 = vmatpush2.msra.mxu0 %v822
        %1347 = vmatprep.subr.mxu0 %v821
        %1348 = vmatpush2.msra.mxu0 %v820
        %1349 = vmatprep.subr.mxu0 %v819
        %1350 = vmatpush2.msra.mxu0 %v818
        %1351 = vmatprep.subr.mxu0 %v817
        %1352 = vmatpush2.msra.mxu0 %v816
        %1353 = vmatprep.subr.mxu0 %v815
        %1354 = vmatpush2.msra.mxu0 %v814
        %1355 = vmatprep.subr.mxu0 %v813
        %1356 = vmatpush2.msra.mxu0 %v812
        %1357 = vmatprep.subr.mxu0 %v811
        %1358 = vmatpush2.msra.mxu0 %v810
        %1359 = vmatprep.subr.mxu0 %v809
        %1360 = vmatpush2.msra.mxu0 %v808
        %1361 = vmatprep.subr.mxu0 %v807
        %1362 = vmatpush2.msra.mxu0 %v806
        %1363 = vmatprep.mubr.f32.mxu0 %v388
        %1364 = vmatmul.mubr.f32.gmra.mxu0 %v387
        %v1365 = vpop.f32.mrf.mxu0
        %v1366 = vadd.f32 %v1295, %v1365
        %v1367 = vpop.f32.mrf.mxu0
        %v1368 = vadd.f32 %v1297, %v1367
        %1369 = vdwg.mxu0
        %1370 = vmatprep.subr.mxu0 0.0
        %1371 = vmatpush1.msra.mxu0 0.0
        %1372 = vmatprep.subr.mxu0 0.0
        %1373 = vmatpush1.msra.mxu0 0.0
        %1374 = vmatprep.subr.mxu0 0.0
        %1375 = vmatpush1.msra.mxu0 0.0
        %1376 = vmatprep.subr.mxu0 0.0
        %1377 = vmatpush1.msra.mxu0 0.0
        %1378 = vmatprep.subr.mxu0 0.0
        %1379 = vmatpush1.msra.mxu0 0.0
        %1380 = vmatprep.subr.mxu0 0.0
        %1381 = vmatpush1.msra.mxu0 0.0
        %1382 = vmatprep.subr.mxu0 0.0
        %1383 = vmatpush1.msra.mxu0 0.0
        %1384 = vmatprep.subr.mxu0 0.0
        %1385 = vmatpush1.msra.mxu0 0.0
        %1386 = vmatprep.subr.mxu0 0.0
        %1387 = vmatpush1.msra.mxu0 0.0
        %1388 = vmatprep.subr.mxu0 0.0
        %1389 = vmatpush1.msra.mxu0 0.0
        %1390 = vmatprep.subr.mxu0 %v871
        %1391 = vmatpush1.msra.mxu0 %v868
        %1392 = vmatprep.subr.mxu0 %v847
        %1393 = vmatpush1.msra.mxu0 %v846
        %1394 = vmatprep.subr.mxu0 %v845
        %1395 = vmatpush1.msra.mxu0 %v844
        %1396 = vmatprep.subr.mxu0 %v843
        %1397 = vmatpush1.msra.mxu0 %v842
        %1398 = vmatprep.subr.mxu0 %v841
        %1399 = vmatpush1.msra.mxu0 %v840
        %1400 = vmatprep.subr.mxu0 %v839
        %1401 = vmatpush1.msra.mxu0 %v838
        %1402 = vmatprep.subr.mxu0 0.0
        %1403 = vmatpush2.msra.mxu0 0.0
        %1404 = vmatprep.subr.mxu0 0.0
        %1405 = vmatpush2.msra.mxu0 0.0
        %1406 = vmatprep.subr.mxu0 0.0
        %1407 = vmatpush2.msra.mxu0 0.0
        %1408 = vmatprep.subr.mxu0 0.0
        %1409 = vmatpush2.msra.mxu0 0.0
        %1410 = vmatprep.subr.mxu0 0.0
        %1411 = vmatpush2.msra.mxu0 0.0
        %1412 = vmatprep.subr.mxu0 0.0
        %1413 = vmatpush2.msra.mxu0 0.0
        %1414 = vmatprep.subr.mxu0 0.0
        %1415 = vmatpush2.msra.mxu0 0.0
        %1416 = vmatprep.subr.mxu0 0.0
        %1417 = vmatpush2.msra.mxu0 0.0
        %1418 = vmatprep.subr.mxu0 0.0
        %1419 = vmatpush2.msra.mxu0 0.0
        %1420 = vmatprep.subr.mxu0 0.0
        %1421 = vmatpush2.msra.mxu0 0.0
        %1422 = vmatprep.subr.mxu0 0.0
        %1423 = vmatpush2.msra.mxu0 0.0
        %1424 = vmatprep.subr.mxu0 0.0
        %1425 = vmatpush2.msra.mxu0 0.0
        %1426 = vmatprep.subr.mxu0 0.0
        %1427 = vmatpush2.msra.mxu0 0.0
        %1428 = vmatprep.subr.mxu0 0.0
        %1429 = vmatpush2.msra.mxu0 0.0
        %1430 = vmatprep.subr.mxu0 0.0
        %1431 = vmatpush2.msra.mxu0 0.0
        %1432 = vmatprep.subr.mxu0 0.0
        %1433 = vmatpush2.msra.mxu0 0.0
        %1434 = vmatprep.mubr.f32.mxu0 0.0
        %1435 = vmatmul.mubr.f32.gmra.mxu0 %v864
        %v1436 = vpop.f32.mrf.mxu0
        %v1437 = vadd.f32 %v1366, %v1436
        %v1438 = vpop.f32.mrf.mxu0
        %v1439 = vadd.f32 %v1368, %v1438
        %1440 = vdwg.mxu0
        %v1441 = vmax.f32 %v1437, 0.0
        %v1442 = vmax.f32 %v1439, 0.0
        %v1443 = vld [vmem:[#allocation8] sm:$0xff]
        %v1444 = vld [vmem:[#allocation8 + $0x8] sm:$0xff]
        %v1445 = vld [vmem:[#allocation8 + $0x10] sm:$0xff]
        %v1446 = vld [vmem:[#allocation8 + $0x18] sm:$0xff]
        %v1447 = vld [vmem:[#allocation8 + $0x20] sm:$0xff]
        %v1448 = vld [vmem:[#allocation8 + $0x28] sm:$0xff]
        %v1449 = vld [vmem:[#allocation8 + $0x30] sm:$0xff]
        %v1450 = vld [vmem:[#allocation8 + $0x38] sm:$0xff]
        %v1451 = vld [vmem:[#allocation8 + $0x40] sm:$0xff]
        %v1452 = vld [vmem:[#allocation8 + $0x48] sm:$0xff]
        %v1453 = vld [vmem:[#allocation8 + $0x50] sm:$0xff]
        %v1454 = vld [vmem:[#allocation8 + $0x58] sm:$0xff]
        %v1455 = vld [vmem:[#allocation8 + $0x60] sm:$0xff]
        %v1456 = vld [vmem:[#allocation8 + $0x68] sm:$0xff]
        %v1457 = vld [vmem:[#allocation8 + $0x70] sm:$0xff]
        %v1458 = vld [vmem:[#allocation8 + $0x78] sm:$0xff]
        %v1459 = vld [vmem:[#allocation8 + $0x80] sm:$0xff]
        %v1460 = vld [vmem:[#allocation8 + $0x88] sm:$0xff]
        %v1461 = vld [vmem:[#allocation8 + $0x90] sm:$0xff]
        %v1462 = vld [vmem:[#allocation8 + $0x98] sm:$0xff]
        %v1463 = vld [vmem:[#allocation8 + $0xa0] sm:$0xff]
        %v1464 = vld [vmem:[#allocation8 + $0xa8] sm:$0xff]
        %v1465 = vld [vmem:[#allocation8 + $0xb0] sm:$0xff]
        %v1466 = vld [vmem:[#allocation8 + $0xb8] sm:$0xff]
        %v1467 = vld [vmem:[#allocation8 + $0xc0] sm:$0xff]
        %v1468 = vld [vmem:[#allocation8 + $0xc8] sm:$0xff]
        %v1469 = vld [vmem:[#allocation8 + $0xd0] sm:$0xff]
        %v1470 = vld [vmem:[#allocation8 + $0xd8] sm:$0xff]
        %v1471 = vld [vmem:[#allocation8 + $0xe0] sm:$0xff]
        %v1472 = vld [vmem:[#allocation8 + $0xe8] sm:$0xff]
        %v1473 = vld [vmem:[#allocation8 + $0xf0] sm:$0xff]
        %v1474 = vld [vmem:[#allocation8 + $0xf8] sm:$0xff]
        %v1475 = vld [vmem:[#allocation8 + $0x100] sm:$0xff]
        %v1476 = vld [vmem:[#allocation8 + $0x108] sm:$0xff]
        %v1477 = vld [vmem:[#allocation8 + $0x110] sm:$0xff]
        %v1478 = vld [vmem:[#allocation8 + $0x118] sm:$0xff]
        %v1479 = vld [vmem:[#allocation8 + $0x120] sm:$0xff]
        %v1480 = vld [vmem:[#allocation8 + $0x128] sm:$0xff]
        %v1481 = vld [vmem:[#allocation8 + $0x130] sm:$0xff]
        %v1482 = vld [vmem:[#allocation8 + $0x138] sm:$0xff]
        %v1483 = vld [vmem:[#allocation8 + $0x140] sm:$0xff]
        %v1484 = vld [vmem:[#allocation8 + $0x148] sm:$0xff]
        %v1485 = vld [vmem:[#allocation8 + $0x150] sm:$0xff]
        %v1486 = vld [vmem:[#allocation8 + $0x158] sm:$0xff]
        %v1487 = vld [vmem:[#allocation8 + $0x160] sm:$0xff]
        %v1488 = vld [vmem:[#allocation8 + $0x168] sm:$0xff]
        %v1489 = vld [vmem:[#allocation8 + $0x170] sm:$0xff]
        %v1490 = vld [vmem:[#allocation8 + $0x178] sm:$0xff]
        %v1491 = vld [vmem:[#allocation8 + $0x180] sm:$0xff]
        %v1492 = vld [vmem:[#allocation8 + $0x188] sm:$0xff]
        %v1493 = vld [vmem:[#allocation8 + $0x190] sm:$0xff]
        %v1494 = vld [vmem:[#allocation8 + $0x198] sm:$0xff]
        %v1495 = vld [vmem:[#allocation8 + $0x1a0] sm:$0xff]
        %v1496 = vld [vmem:[#allocation8 + $0x1a8] sm:$0xff]
        %v1497 = vld [vmem:[#allocation8 + $0x1b0] sm:$0xff]
        %v1498 = vld [vmem:[#allocation8 + $0x1b8] sm:$0xff]
        %v1499 = vld [vmem:[#allocation8 + $0x1c0] sm:$0xff]
        %v1500 = vld [vmem:[#allocation8 + $0x1c8] sm:$0xff]
        %v1501 = vld [vmem:[#allocation8 + $0x1d0] sm:$0xff]
        %v1502 = vld [vmem:[#allocation8 + $0x1d8] sm:$0xff]
        %v1503 = vld [vmem:[#allocation8 + $0x1e0] sm:$0xff]
        %v1504 = vld [vmem:[#allocation8 + $0x1e8] sm:$0xff]
        %v1505 = vld [vmem:[#allocation8 + $0x1f0] sm:$0xff]
        %v1506 = vld [vmem:[#allocation8 + $0x1f8] sm:$0xff]
        %v1507 = vld [vmem:[#allocation10] sm:$0x3]
        %v1509 = vlaneseq
        %v1510 = vshrl.u32 %v1509, 7
        %v1511 = vsub.s32 0, %v1510
        %v1512 = vrot.slane %v1507, %v1511
        %v1513 = vlaneseq
        %v1514 = vshrl.u32 %v1513, 7
        %v1515 = vsub.s32 1, %v1514
        %v1516 = vrot.slane %v1507, %v1515
        %1519 = vmatprep.subr.mxu0 %v1474
        %1520 = vmatpush1.msra.mxu0 %v1473
        %1521 = vmatprep.subr.mxu0 %v1472
        %1522 = vmatpush1.msra.mxu0 %v1471
        %1523 = vmatprep.subr.mxu0 %v1470
        %1524 = vmatpush1.msra.mxu0 %v1469
        %1525 = vmatprep.subr.mxu0 %v1468
        %1526 = vmatpush1.msra.mxu0 %v1467
        %1527 = vmatprep.subr.mxu0 %v1466
        %1528 = vmatpush1.msra.mxu0 %v1465
        %1529 = vmatprep.subr.mxu0 %v1464
        %1530 = vmatpush1.msra.mxu0 %v1463
        %1531 = vmatprep.subr.mxu0 %v1462
        %1532 = vmatpush1.msra.mxu0 %v1461
        %1533 = vmatprep.subr.mxu0 %v1460
        %1534 = vmatpush1.msra.mxu0 %v1459
        %1535 = vmatprep.subr.mxu0 %v1458
        %1536 = vmatpush1.msra.mxu0 %v1457
        %1537 = vmatprep.subr.mxu0 %v1456
        %1538 = vmatpush1.msra.mxu0 %v1455
        %1539 = vmatprep.subr.mxu0 %v1454
        %1540 = vmatpush1.msra.mxu0 %v1453
        %1541 = vmatprep.subr.mxu0 %v1452
        %1542 = vmatpush1.msra.mxu0 %v1451
        %1543 = vmatprep.subr.mxu0 %v1450
        %1544 = vmatpush1.msra.mxu0 %v1449
        %1545 = vmatprep.subr.mxu0 %v1448
        %1546 = vmatpush1.msra.mxu0 %v1447
        %1547 = vmatprep.subr.mxu0 %v1446
        %1548 = vmatpush1.msra.mxu0 %v1445
        %1549 = vmatprep.subr.mxu0 %v1444
        %1550 = vmatpush1.msra.mxu0 %v1443
        %1551 = vmatprep.subr.mxu0 %v1506
        %1552 = vmatpush2.msra.mxu0 %v1505
        %1553 = vmatprep.subr.mxu0 %v1504
        %1554 = vmatpush2.msra.mxu0 %v1503
        %1555 = vmatprep.subr.mxu0 %v1502
        %1556 = vmatpush2.msra.mxu0 %v1501
        %1557 = vmatprep.subr.mxu0 %v1500
        %1558 = vmatpush2.msra.mxu0 %v1499
        %1559 = vmatprep.subr.mxu0 %v1498
        %1560 = vmatpush2.msra.mxu0 %v1497
        %1561 = vmatprep.subr.mxu0 %v1496
        %1562 = vmatpush2.msra.mxu0 %v1495
        %1563 = vmatprep.subr.mxu0 %v1494
        %1564 = vmatpush2.msra.mxu0 %v1493
        %1565 = vmatprep.subr.mxu0 %v1492
        %1566 = vmatpush2.msra.mxu0 %v1491
        %1567 = vmatprep.subr.mxu0 %v1490
        %1568 = vmatpush2.msra.mxu0 %v1489
        %1569 = vmatprep.subr.mxu0 %v1488
        %1570 = vmatpush2.msra.mxu0 %v1487
        %1571 = vmatprep.subr.mxu0 %v1486
        %1572 = vmatpush2.msra.mxu0 %v1485
        %1573 = vmatprep.subr.mxu0 %v1484
        %1574 = vmatpush2.msra.mxu0 %v1483
        %1575 = vmatprep.subr.mxu0 %v1482
        %1576 = vmatpush2.msra.mxu0 %v1481
        %1577 = vmatprep.subr.mxu0 %v1480
        %1578 = vmatpush2.msra.mxu0 %v1479
        %1579 = vmatprep.subr.mxu0 %v1478
        %1580 = vmatpush2.msra.mxu0 %v1477
        %1581 = vmatprep.subr.mxu0 %v1476
        %1582 = vmatpush2.msra.mxu0 %v1475
        %1583 = vmatprep.mubr.f32.mxu0 %v1442
        %1584 = vmatmul.mubr.f32.gmra.mxu0 %v1441
        %v1585 = vpop.f32.mrf.mxu0
        %v1586 = vadd.f32 %v1512, %v1585
        %v1587 = vpop.f32.mrf.mxu0
        %v1588 = vadd.f32 %v1516, %v1587
        %1589 = vdwg.mxu0
        %v1590 = vmax.f32 %v1586, 0.0
        %v1591 = vmax.f32 %v1588, 0.0
        %v1592 = vld [vmem:[#allocation11] sm:$0xff]
        %v1593 = vld [vmem:[#allocation11 + $0x8] sm:$0xff]
        %v1594 = vld [vmem:[#allocation11 + $0x10] sm:$0xff]
        %v1595 = vld [vmem:[#allocation11 + $0x18] sm:$0xff]
        %v1596 = vld [vmem:[#allocation11 + $0x20] sm:$0xff]
        %v1597 = vld [vmem:[#allocation11 + $0x28] sm:$0xff]
        %v1598 = vld [vmem:[#allocation11 + $0x30] sm:$0xff]
        %v1599 = vld [vmem:[#allocation11 + $0x38] sm:$0xff]
        %v1600 = vld [vmem:[#allocation11 + $0x40] sm:$0xff]
        %v1601 = vld [vmem:[#allocation11 + $0x48] sm:$0xff]
        %v1602 = vld [vmem:[#allocation11 + $0x50] sm:$0xff]
        %v1603 = vld [vmem:[#allocation11 + $0x58] sm:$0xff]
        %v1604 = vld [vmem:[#allocation11 + $0x60] sm:$0xff]
        %v1605 = vld [vmem:[#allocation11 + $0x68] sm:$0xff]
        %v1606 = vld [vmem:[#allocation11 + $0x70] sm:$0xff]
        %v1607 = vld [vmem:[#allocation11 + $0x78] sm:$0xff]
        %v1608 = vld [vmem:[#allocation11 + $0x80] sm:$0xff]
        %v1609 = vld [vmem:[#allocation11 + $0x88] sm:$0xff]
        %v1610 = vld [vmem:[#allocation11 + $0x90] sm:$0xff]
        %v1611 = vld [vmem:[#allocation11 + $0x98] sm:$0xff]
        %v1612 = vld [vmem:[#allocation11 + $0xa0] sm:$0xff]
        %v1613 = vld [vmem:[#allocation11 + $0xa8] sm:$0xff]
        %v1614 = vld [vmem:[#allocation11 + $0xb0] sm:$0xff]
        %v1615 = vld [vmem:[#allocation11 + $0xb8] sm:$0xff]
        %v1616 = vld [vmem:[#allocation11 + $0xc0] sm:$0xff]
        %v1617 = vld [vmem:[#allocation11 + $0xc8] sm:$0xff]
        %v1618 = vld [vmem:[#allocation11 + $0xd0] sm:$0xff]
        %v1619 = vld [vmem:[#allocation11 + $0xd8] sm:$0xff]
        %v1620 = vld [vmem:[#allocation11 + $0xe0] sm:$0xff]
        %v1621 = vld [vmem:[#allocation11 + $0xe8] sm:$0xff]
        %v1622 = vld [vmem:[#allocation11 + $0xf0] sm:$0xff]
        %v1623 = vld [vmem:[#allocation11 + $0xf8] sm:$0xff]
        %v1624 = vld [vmem:[#allocation11 + $0x100] sm:$0xff]
        %v1625 = vld [vmem:[#allocation11 + $0x108] sm:$0xff]
        %v1626 = vld [vmem:[#allocation11 + $0x110] sm:$0xff]
        %v1627 = vld [vmem:[#allocation11 + $0x118] sm:$0xff]
        %v1628 = vld [vmem:[#allocation11 + $0x120] sm:$0xff]
        %v1629 = vld [vmem:[#allocation11 + $0x128] sm:$0xff]
        %v1630 = vld [vmem:[#allocation11 + $0x130] sm:$0xff]
        %v1631 = vld [vmem:[#allocation11 + $0x138] sm:$0xff]
        %v1632 = vld [vmem:[#allocation11 + $0x140] sm:$0xff]
        %v1633 = vld [vmem:[#allocation11 + $0x148] sm:$0xff]
        %v1634 = vld [vmem:[#allocation11 + $0x150] sm:$0xff]
        %v1635 = vld [vmem:[#allocation11 + $0x158] sm:$0xff]
        %v1636 = vld [vmem:[#allocation11 + $0x160] sm:$0xff]
        %v1637 = vld [vmem:[#allocation11 + $0x168] sm:$0xff]
        %v1638 = vld [vmem:[#allocation11 + $0x170] sm:$0xff]
        %v1639 = vld [vmem:[#allocation11 + $0x178] sm:$0xff]
        %v1640 = vld [vmem:[#allocation11 + $0x180] sm:$0xff]
        %v1641 = vld [vmem:[#allocation11 + $0x188] sm:$0xff]
        %v1642 = vld [vmem:[#allocation11 + $0x190] sm:$0xff]
        %v1643 = vld [vmem:[#allocation11 + $0x198] sm:$0xff]
        %v1644 = vld [vmem:[#allocation11 + $0x1a0] sm:$0xff]
        %v1645 = vld [vmem:[#allocation11 + $0x1a8] sm:$0xff]
        %v1646 = vld [vmem:[#allocation11 + $0x1b0] sm:$0xff]
        %v1647 = vld [vmem:[#allocation11 + $0x1b8] sm:$0xff]
        %v1648 = vld [vmem:[#allocation11 + $0x1c0] sm:$0xff]
        %v1649 = vld [vmem:[#allocation11 + $0x1c8] sm:$0xff]
        %v1650 = vld [vmem:[#allocation11 + $0x1d0] sm:$0xff]
        %v1651 = vld [vmem:[#allocation11 + $0x1d8] sm:$0xff]
        %v1652 = vld [vmem:[#allocation11 + $0x1e0] sm:$0xff]
        %v1653 = vld [vmem:[#allocation11 + $0x1e8] sm:$0xff]
        %v1654 = vld [vmem:[#allocation11 + $0x1f0] sm:$0xff]
        %v1655 = vld [vmem:[#allocation11 + $0x1f8] sm:$0xff]
        %1656 = vmatprep.subr.mxu0 %v1623
        %1657 = vmatpush1.msra.mxu0 %v1622
        %1658 = vmatprep.subr.mxu0 %v1621
        %1659 = vmatpush1.msra.mxu0 %v1620
        %1660 = vmatprep.subr.mxu0 %v1619
        %1661 = vmatpush1.msra.mxu0 %v1618
        %1662 = vmatprep.subr.mxu0 %v1617
        %1663 = vmatpush1.msra.mxu0 %v1616
        %1664 = vmatprep.subr.mxu0 %v1615
        %1665 = vmatpush1.msra.mxu0 %v1614
        %1666 = vmatprep.subr.mxu0 %v1613
        %1667 = vmatpush1.msra.mxu0 %v1612
        %1668 = vmatprep.subr.mxu0 %v1611
        %1669 = vmatpush1.msra.mxu0 %v1610
        %1670 = vmatprep.subr.mxu0 %v1609
        %1671 = vmatpush1.msra.mxu0 %v1608
        %1672 = vmatprep.subr.mxu0 %v1607
        %1673 = vmatpush1.msra.mxu0 %v1606
        %1674 = vmatprep.subr.mxu0 %v1605
        %1675 = vmatpush1.msra.mxu0 %v1604
        %1676 = vmatprep.subr.mxu0 %v1603
        %1677 = vmatpush1.msra.mxu0 %v1602
        %1678 = vmatprep.subr.mxu0 %v1601
        %1679 = vmatpush1.msra.mxu0 %v1600
        %1680 = vmatprep.subr.mxu0 %v1599
        %1681 = vmatpush1.msra.mxu0 %v1598
        %1682 = vmatprep.subr.mxu0 %v1597
        %1683 = vmatpush1.msra.mxu0 %v1596
        %1684 = vmatprep.subr.mxu0 %v1595
        %1685 = vmatpush1.msra.mxu0 %v1594
        %1686 = vmatprep.subr.mxu0 %v1593
        %1687 = vmatpush1.msra.mxu0 %v1592
        %1688 = vmatprep.subr.mxu0 %v1655
        %1689 = vmatpush2.msra.mxu0 %v1654
        %1690 = vmatprep.subr.mxu0 %v1653
        %1691 = vmatpush2.msra.mxu0 %v1652
        %1692 = vmatprep.subr.mxu0 %v1651
        %1693 = vmatpush2.msra.mxu0 %v1650
        %1694 = vmatprep.subr.mxu0 %v1649
        %1695 = vmatpush2.msra.mxu0 %v1648
        %1696 = vmatprep.subr.mxu0 %v1647
        %1697 = vmatpush2.msra.mxu0 %v1646
        %1698 = vmatprep.subr.mxu0 %v1645
        %1699 = vmatpush2.msra.mxu0 %v1644
        %1700 = vmatprep.subr.mxu0 %v1643
        %1701 = vmatpush2.msra.mxu0 %v1642
        %1702 = vmatprep.subr.mxu0 %v1641
        %1703 = vmatpush2.msra.mxu0 %v1640
        %1704 = vmatprep.subr.mxu0 %v1639
        %1705 = vmatpush2.msra.mxu0 %v1638
        %1706 = vmatprep.subr.mxu0 %v1637
        %1707 = vmatpush2.msra.mxu0 %v1636
        %1708 = vmatprep.subr.mxu0 %v1635
        %1709 = vmatpush2.msra.mxu0 %v1634
        %1710 = vmatprep.subr.mxu0 %v1633
        %1711 = vmatpush2.msra.mxu0 %v1632
        %1712 = vmatprep.subr.mxu0 %v1631
        %1713 = vmatpush2.msra.mxu0 %v1630
        %1714 = vmatprep.subr.mxu0 %v1629
        %1715 = vmatpush2.msra.mxu0 %v1628
        %1716 = vmatprep.subr.mxu0 %v1627
        %1717 = vmatpush2.msra.mxu0 %v1626
        %1718 = vmatprep.subr.mxu0 %v1625
        %1719 = vmatpush2.msra.mxu0 %v1624
        %1720 = vmatprep.mubr.f32.mxu0 %v1591
        %1721 = vmatmul.mubr.f32.gmra.mxu0 %v1590
        %v1722 = vpop.f32.mrf.mxu0
        %v1723 = vadd.f32 0.0, %v1722
        %v1724 = vpop.f32.mrf.mxu0
        %v1725 = vadd.f32 0.0, %v1724
        %1726 = vdwg.mxu0
        %1727 = vst [vmem:[%s374] sm:$0xff] %v1723
        %1728 = vst [vmem:[%s374 + $0x8] sm:$0xff] %v1725
        %v1729 = vxor.u32 %v1723, 2147483648
        %v1730 = vxor.u32 %v1725, 2147483648
        %v1731 = vmul.f32 %v1729, 1.442695
        %v1732 = vpow.pop %v1731
        %v1733 = vmul.f32 %v1730, 1.442695
        %v1734 = vpow.pop %v1733
        %v1735 = vadd.f32 %v1732, 1.0
        %v1736 = vadd.f32 %v1734, 1.0
        %v1737 = vrcp.pop %v1735
        %v1738 = vmul.f32 1.0, %v1737
        %v1739 = vrcp.pop %v1736
        %v1740 = vmul.f32 1.0, %v1739
        %1741 = vst [vmem:[%s367] sm:$0xff] %v1738
        %1742 = vst [vmem:[%s367 + $0x8] sm:$0xff] %v1740
        %s1743 = sand.u32 %s170, 1
        %s1744 = scalar_lea.sflag [#allocation4], %s1743
        %s1745 = sand.u32 %s170, 1
        %s1746 = smul.addr %s1745, 16
        %s1747 = scalar_lea.vmem [#allocation13], %s1746
        %s1748 = sand.u32 %s196, 1
        %s1749 = scalar_lea.sflag [#allocation15], %s1748
        %s1750 = sand.u32 %s196, 1
        %s1751 = smul.addr %s1750, 16
        %s1752 = scalar_lea.vmem [#allocation14], %s1751
        // Predicated region
        $region69: #{tpu_custom_call.1} parent=43 // pred_check
          %p1753 = pneg %p180
        $region70: #{tpu_custom_call.1} parent=43 // pred_check_branch
          %1755 = sbr.rel (%p1753) target = $region72
        $region71: #{tpu_custom_call.1} parent=43 // pred_region
          %s1757 = ssub.s32 256, 256
          %1758 = vsyncadd %s1744, %s1757
          %s1759 = smul.addr %s31, 2
          %s1760 = smul.addr %s1759, 128
          %s1761 = scalar_lea.hbm %s6, %s1760
          %s1763 = sshll.u32 %s1747, 4
          %s1764 = int_to_ptr.vmem [resolvable:$true] %s1763
          %1766 = dma.vmem_to_hbm [thread:$0]  %s1764, 256, %s1761, %s1744
        $region72: #{tpu_custom_call.1} parent=43 // pred_fallthru
          _
        // Predicated region
        $region73: #{tpu_custom_call.1} parent=43 // pred_check
          %p1767 = pneg %p206
        $region74: #{tpu_custom_call.1} parent=43 // pred_check_branch
          %1769 = sbr.rel (%p1767) target = $region76
        $region75: #{tpu_custom_call.1} parent=43 // pred_region
          %s1771 = ssub.s32 256, 256
          %1772 = vsyncadd %s1749, %s1771
          %s1773 = smul.addr %s31, 2
          %s1774 = smul.addr %s1773, 128
          %s1775 = scalar_lea.hbm %s7, %s1774
          %s1777 = sshll.u32 %s1752, 4
          %s1778 = int_to_ptr.vmem [resolvable:$true] %s1777
          %1780 = dma.vmem_to_hbm [thread:$0]  %s1778, 256, %s1775, %s1749
        $region76: #{tpu_custom_call.1} parent=43 // pred_fallthru
          _
      $region44: #{tpu_custom_call.1} parent=5 // pred_fallthru
        _
      %p1781 = scmp.le.s32.totalorder 2, %s26
      // Predicated region
      $region77: #{tpu_custom_call.1} parent=5 // pred_check
        %p1782 = pneg %p1781
      $region78: #{tpu_custom_call.1} parent=5 // pred_check_branch
        %1784 = sbr.rel (%p1782) target = $region80
      $region79: #{tpu_custom_call.1} parent=5 // pred_region
        %s1785 = ssub.s32 %s26, 2
        // Predicated region
        $region81: #{tpu_custom_call.1} parent=79 // pred_check
          %p1786 = pneg %p186
        $region82: #{tpu_custom_call.1} parent=79 // pred_check_branch
          %1788 = sbr.rel (%p1786) target = $region84
        $region83: #{tpu_custom_call.1} parent=79 // pred_region
          %s1789 = sand.u32 %s171, 1
          %s1790 = scalar_lea.sflag [#allocation4], %s1789
          %s1791 = sand.u32 %s171, 1
          %s1792 = smul.addr %s1791, 16
          %s1793 = scalar_lea.vmem [#allocation13], %s1792
          %1794 = dma.done %s1790, 256
        $region84: #{tpu_custom_call.1} parent=79 // pred_fallthru
          _
        // Predicated region
        $region85: #{tpu_custom_call.1} parent=79 // pred_check
          %p1795 = pneg %p212
        $region86: #{tpu_custom_call.1} parent=79 // pred_check_branch
          %1797 = sbr.rel (%p1795) target = $region88
        $region87: #{tpu_custom_call.1} parent=79 // pred_region
          %s1798 = sand.u32 %s197, 1
          %s1799 = scalar_lea.sflag [#allocation15], %s1798
          %s1800 = sand.u32 %s197, 1
          %s1801 = smul.addr %s1800, 16
          %s1802 = scalar_lea.vmem [#allocation14], %s1801
          %1803 = dma.done %s1799, 256
        $region88: #{tpu_custom_call.1} parent=79 // pred_fallthru
          _
      $region80: #{tpu_custom_call.1} parent=5 // pred_fallthru
        _
    $region6: #{tpu_custom_call.1} parent=1 // loop_footer
      %s30 = sadd.s32 1, %s26
    $region7: #{tpu_custom_call.1} parent=1 // loop_footer_branch
      %25 = sbr.rel target = $region3
    $region8: #{tpu_custom_call.1} parent=1 // loop_exit
      _
    %1804 = vsyncpa [#allocation3], 1
    %s1805 = scalar_lea.sflag [#allocation3], 1
    %1806 = vsyncpa %s1805, 1
    %1807 = vsyncpa [#allocation6], 1
    %1808 = vsyncpa [#allocation9], 1
    %1809 = vsyncpa [#allocation12], 1
    %1810 = vsyncpa [#allocation4], 1
    %s1811 = scalar_lea.sflag [#allocation4], 1
    %1812 = vsyncpa %s1811, 1
    %1813 = vsyncpa [#allocation15], 1
    %s1814 = scalar_lea.sflag [#allocation15], 1
    %1815 = vsyncpa %s1814, 1

</llo_original>
